<compile_context>
chip_gen: v7x
topology: tpu7x:2x2x1
jax: 0.10.0
libtpu: 0.0.40
codegen_flags: <defaults>
</compile_context>

<pallas_src>
import functools

import jax
import jax.numpy as jnp
from jax.experimental import pallas as pl
from jax.experimental.pallas import tpu as pltpu

KH = KW = 3          # kernel size of both convs
LRN_SIZE = 5
LRN_ALPHA = 1e-4
LRN_BETA = 0.75      # implemented as rsqrt(base) * sqrt(rsqrt(base))
LRN_K = 1.0


def _round_up(x, m):
    return -(-x // m) * m


# -----------------------------------------------------------------------------
# Fused Pallas kernel: conv1 + bias + ReLU + conv2 + bias + LRN(5)
# -----------------------------------------------------------------------------
def _fused_kernel(xs_ref, w1_ref, b1_ref, w2_ref, b2_ref, band_ref, o_ref,
                  y1_ref, y1s_ref, *, W, L2):
    # xs_ref:  (1, 9*Cin, X1)  im2col'd input slab (K=27 on sublanes)
    # w1_ref:  (C1, 9*Cin)     b1_ref: (C1, 1)
    # w2_ref:  (C2, 9*C1)      b2_ref: (C2, 1)
    # band_ref:(C2, C2)        precomputed |i-j|<=2 LRN band
    # o_ref:   (1, C2, L2)     L2 is a multiple of 128 -> unmasked stores
    # y1_ref:  VMEM (C1, X1)   conv1 activation, stays on-chip
    # y1s_ref: VMEM (9*C1, L2) tap-stacked conv1 activation (K=288 for conv2)
    C1 = w1_ref.shape[0]

    # ---- conv1 (+bias, ReLU): ONE K=27 matmul -------------------------------
    y1 = jnp.dot(w1_ref[...], xs_ref[0], preferred_element_type=jnp.float32)
    y1_ref[...] = jnp.maximum(y1 + b1_ref[...], 0.0)

    # ---- tap-stack y1: 9 shifted copies into a (9*C1, L2) VMEM slab ---------
    # (sublane-aligned destinations, full-lane-width stores; the lane shifts
    #  happen here once instead of inside 9 separate matmul operand reads)
    for t in range(KH * KW):
        dy, dx = divmod(t, KW)
        off = dy * W + dx
        y1s_ref[t * C1:(t + 1) * C1, :] = y1_ref[:, off:off + L2]

    # ---- conv2 (+bias): ONE K=288 matmul ------------------------------------
    y2 = jnp.dot(w2_ref[...], y1s_ref[...],
                 preferred_element_type=jnp.float32) + b2_ref[...]

    # ---- LocalResponseNorm(size=5, alpha=1e-4, beta=0.75, k=1) --------------
    # Windowed cross-channel sum via the precomputed band on the (otherwise
    # idle) MXU; base**-0.75 via rsqrt/sqrt on the EUP (no exp/log/div).
    wsum = jnp.dot(band_ref[...], y2 * y2, preferred_element_type=jnp.float32)
    base = LRN_K + (LRN_ALPHA / LRN_SIZE) * wsum
    r = jax.lax.rsqrt(base)                                # base**-0.5
    o_ref[0] = y2 * (r * jnp.sqrt(r))                      # y2 * base**-0.75


# -----------------------------------------------------------------------------
# Wrapper
# -----------------------------------------------------------------------------
@jax.jit
def dcfnet_feature_forward(x_nchw, params):
    w1, b1, w2, b2 = params
    N, Cin, H, W = x_nchw.shape
    C1 = w1.shape[0]
    C2 = w2.shape[0]
    H2 = H - 2 * (KH - 1)
    W2 = W - 2 * (KW - 1)

    # Batch grouping: 2 grid steps when the batch allows (keeps both v7x
    # TensorCores busy), remaining batch folded into the lane dimension.
    G = 2 if (N % 2 == 0 and N >= 2) else 1
    P = N // G

    Lg = P * H * W                                   # flat length of one group
    L2 = _round_up(Lg, 128)                          # lane-dense output width
    X1 = L2 + (KH - 1) * W + (KW - 1)                # conv1 width conv2 needs
    Lx = L2 + 2 * (KH - 1) * W + 2 * (KW - 1)        # zero-padded input width

    f32 = jnp.float32
    # Layout plumbing (wrapper-side, fused by XLA, never touches the kernel):
    x2d = (x_nchw.reshape(N, Cin, H * W)
                 .reshape(G, P, Cin, H * W)
                 .transpose(0, 2, 1, 3)
                 .reshape(G, Cin, Lg)
                 .astype(f32))
    # Zero-pad the flat tail so every "garbage" lane the kernel touches is
    # finite (valid outputs never read across an image boundary).
    xpad = jnp.pad(x2d, ((0, 0), (0, 0), (0, Lx - Lg)))
    offs = [dy * W + dx for dy in range(KH) for dx in range(KW)]
    # im2col for conv1: K = 9*Cin = 27 stacked on sublanes.
    x_stack = jnp.concatenate([xpad[:, :, o:o + X1] for o in offs], axis=1)

    w1m = jnp.transpose(w1, (0, 2, 3, 1)).reshape(C1, KH * KW * Cin).astype(f32)
    w2m = jnp.transpose(w2, (0, 2, 3, 1)).reshape(C2, KH * KW * C1).astype(f32)
    b1c = b1.reshape(C1, 1).astype(f32)
    b2c = b2.reshape(C2, 1).astype(f32)
    idx = jnp.arange(C2)
    band = (jnp.abs(idx[:, None] - idx[None, :]) <= LRN_SIZE // 2).astype(f32)

    flops = G * 2 * (C1 * (KH * KW * Cin) * X1          # conv1
                     + C2 * (KH * KW * C1) * L2         # conv2
                     + C2 * C2 * L2)                    # LRN band matmul
    bytes_accessed = 4 * (G * (KH * KW * Cin) * X1 + C1 * KH * KW * Cin
                          + C2 * KH * KW * C1 + C1 + C2 + C2 * C2
                          + G * C2 * L2)

    out_flat = pl.pallas_call(
        functools.partial(_fused_kernel, W=W, L2=L2),
        out_shape=jax.ShapeDtypeStruct((G, C2, L2), f32),
        grid=(G,),
        in_specs=[
            pl.BlockSpec((1, KH * KW * Cin, X1), lambda g: (g, 0, 0)),
            pl.BlockSpec((C1, KH * KW * Cin), lambda g: (0, 0)),
            pl.BlockSpec((C1, 1), lambda g: (0, 0)),
            pl.BlockSpec((C2, KH * KW * C1), lambda g: (0, 0)),
            pl.BlockSpec((C2, 1), lambda g: (0, 0)),
            pl.BlockSpec((C2, C2), lambda g: (0, 0)),
        ],
        out_specs=pl.BlockSpec((1, C2, L2), lambda g: (g, 0, 0)),
        scratch_shapes=[pltpu.VMEM((C1, X1), f32),
                        pltpu.VMEM((KH * KW * C1, L2), f32)],
        compiler_params=pltpu.CompilerParams(
            dimension_semantics=("parallel",)),
        cost_estimate=pl.CostEstimate(flops=flops,
                                      transcendentals=2 * G * C2 * L2,
                                      bytes_accessed=bytes_accessed),
    )(x_stack, w1m, b1c, w2m, b2c, band)

    # Full-width flat grid -> (N, C2, H2, W2): keep each image's H*W stripe,
    # reshape into rows of width W, drop the wrap-around garbage rows/cols.
    out = out_flat[:, :, :Lg].reshape(G, C2, P, H, W)[:, :, :, :H2, :W2]
    out = out.transpose(0, 2, 1, 3, 4).reshape(N, C2, H2, W2)
    return out


# -----------------------------------------------------------------------------
# Pure-JAX reference (for self-check)
# -----------------------------------------------------------------------------
def reference_forward(x, params):
    w1, b1, w2, b2 = params
    dn = ("NCHW", "OIHW", "NCHW")
    hp = jax.lax.Precision.HIGHEST
    y = jax.lax.conv_general_dilated(x, w1, (1, 1), "VALID",
                                     dimension_numbers=dn, precision=hp)
    y = jnp.maximum(y + b1[None, :, None, None], 0.0)
    y = jax.lax.conv_general_dilated(y, w2, (1, 1), "VALID",
                                     dimension_numbers=dn, precision=hp)
    y = y + b2[None, :, None, None]
    # LocalResponseNorm(size=5, alpha=1e-4, beta=0.75, k=1), PyTorch semantics
    sq = y * y
    C = y.shape[1]
    pad = jnp.pad(sq, ((0, 0), (2, 2), (0, 0), (0, 0)))
    wsum = sum(pad[:, i:i + C] for i in range(5))
    denom = (1.0 + (1e-4 / 5.0) * wsum) ** 0.75
    return y / denom


# -----------------------------------------------------------------------------
if __name__ == "__main__":
    key = jax.random.PRNGKey(0)
    kx, k1, k2, k3, k4 = jax.random.split(key, 5)

    # Input: NCHW, batch=2, 3 channels (Conv2d(3,32,3) requires 3), 16x16 spatial
    x = jax.random.normal(kx, (2, 3, 16, 16), dtype=jnp.float32)

    # Deterministic parameter init (shapes from DCFNetFeature.__init__)
    w1 = 0.1 * jax.random.normal(k1, (32, 3, 3, 3), dtype=jnp.float32)   # Conv2d(3,32,3)
    b1 = 0.1 * jax.random.normal(k2, (32,), dtype=jnp.float32)
    w2 = 0.1 * jax.random.normal(k3, (32, 32, 3, 3), dtype=jnp.float32)  # Conv2d(32,32,3)
    b2 = 0.1 * jax.random.normal(k4, (32,), dtype=jnp.float32)
    params = (w1, b1, w2, b2)

    out = dcfnet_feature_forward(x, params)
    out = jax.block_until_ready(out)
    assert out.shape == (2, 32, 12, 12), out.shape

    ref = jax.block_until_ready(reference_forward(x, params))
    assert jnp.allclose(out, ref, rtol=2e-3, atol=2e-3), float(
        jnp.max(jnp.abs(out - ref)))

    print("KERNEL_OK")
</pallas_src>

<mosaic_0001>
module attributes {stable_mosaic.version = 11 : i64} {
  func.func @_fused_kernel(%arg0: i32, %arg1: memref<1x27x290xf32, #tpu.memory_space<vmem>>, %arg2: memref<32x27xf32, #tpu.memory_space<vmem>>, %arg3: memref<32x1xf32, #tpu.memory_space<vmem>>, %arg4: memref<32x288xf32, #tpu.memory_space<vmem>>, %arg5: memref<32x1xf32, #tpu.memory_space<vmem>>, %arg6: memref<32x32xf32, #tpu.memory_space<vmem>>, %arg7: memref<1x32x256xf32, #tpu.memory_space<vmem>>, %arg8: memref<32x290xf32, #tpu.memory_space<vmem>>, %arg9: memref<288x256xf32, #tpu.memory_space<vmem>>) attributes {dimension_semantics = [#tpu.dimension_semantics<parallel>], iteration_bounds = array<i64: 2>, scalar_prefetch = 0 : i64, scratch_operands = 2 : i64, tpu.core_type = #tpu.core_type<tc>, window_params = [{transform_indices = @transform_0, window_bounds = array<i64: 1, 27, 290>}, {pipeline_mode = #tpu.pipeline_mode<synchronous>, transform_indices = @transform_1, window_bounds = array<i64: 32, 27>}, {pipeline_mode = #tpu.pipeline_mode<synchronous>, transform_indices = @transform_2, window_bounds = array<i64: 32, 1>}, {pipeline_mode = #tpu.pipeline_mode<synchronous>, transform_indices = @transform_3, window_bounds = array<i64: 32, 288>}, {pipeline_mode = #tpu.pipeline_mode<synchronous>, transform_indices = @transform_4, window_bounds = array<i64: 32, 1>}, {pipeline_mode = #tpu.pipeline_mode<synchronous>, transform_indices = @transform_5, window_bounds = array<i64: 32, 32>}, {transform_indices = @transform_6, window_bounds = array<i64: 1, 32, 256>}]} {
    %c0 = arith.constant 0 : index
    %c0_0 = arith.constant 0 : index
    %0 = vector.load %arg2[%c0, %c0_0] : memref<32x27xf32, #tpu.memory_space<vmem>>, vector<32x27xf32>
    %c0_1 = arith.constant 0 : index
    %c0_2 = arith.constant 0 : index
    %c0_3 = arith.constant 0 : index
    %1 = vector.load %arg1[%c0_1, %c0_2, %c0_3] : memref<1x27x290xf32, #tpu.memory_space<vmem>>, vector<1x27x290xf32>
    %2 = vector.shape_cast %1 : vector<1x27x290xf32> to vector<27x290xf32>
    %cst = arith.constant dense<0.000000e+00> : vector<32x290xf32>
    %3 = tpu.matmul %0, %2, %cst {dimension_numbers = #tpu.dot_dimension_numbers<[1], [0], [0], [1], [0, 0, 1, 1], [], []>} : vector<32x27xf32>, vector<27x290xf32>, vector<32x290xf32> -> vector<32x290xf32>
    %c0_4 = arith.constant 0 : index
    %c0_5 = arith.constant 0 : index
    %4 = vector.load %arg3[%c0_4, %c0_5] : memref<32x1xf32, #tpu.memory_space<vmem>>, vector<32x1xf32>
    %5 = vector.broadcast %4 : vector<32x1xf32> to vector<32x290xf32>
    %6 = arith.addf %3, %5 : vector<32x290xf32>
    %cst_6 = arith.constant 0.000000e+00 : f32
    %7 = vector.broadcast %cst_6 : f32 to vector<32x290xf32>
    %8 = arith.maximumf %6, %7 : vector<32x290xf32>
    %c0_7 = arith.constant 0 : index
    %c0_8 = arith.constant 0 : index
    %9 = vector.load %arg8[%c0_7, %c0_8] : memref<32x290xf32, #tpu.memory_space<vmem>>, vector<32x290xf32>
    tpu.vector_store %arg8[%c0_7, %c0_8], %8 {strides = array<i32>} : memref<32x290xf32, #tpu.memory_space<vmem>>, vector<32x290xf32>,
    %c0_9 = arith.constant 0 : index
    %c0_10 = arith.constant 0 : index
    %10 = vector.load %arg8[%c0_9, %c0_10] : memref<32x290xf32, #tpu.memory_space<vmem>>, vector<32x256xf32>
    %c0_11 = arith.constant 0 : index
    %c0_12 = arith.constant 0 : index
    %11 = vector.load %arg9[%c0_11, %c0_12] : memref<288x256xf32, #tpu.memory_space<vmem>>, vector<32x256xf32>
    tpu.vector_store %arg9[%c0_11, %c0_12], %10 {strides = array<i32>} : memref<288x256xf32, #tpu.memory_space<vmem>>, vector<32x256xf32>,
    %c0_13 = arith.constant 0 : index
    %c1 = arith.constant 1 : index
    %12 = vector.load %arg8[%c0_13, %c1] : memref<32x290xf32, #tpu.memory_space<vmem>>, vector<32x256xf32>
    %c32 = arith.constant 32 : index
    %c0_14 = arith.constant 0 : index
    %13 = vector.load %arg9[%c32, %c0_14] : memref<288x256xf32, #tpu.memory_space<vmem>>, vector<32x256xf32>
    tpu.vector_store %arg9[%c32, %c0_14], %12 {strides = array<i32>} : memref<288x256xf32, #tpu.memory_space<vmem>>, vector<32x256xf32>,
    %c0_15 = arith.constant 0 : index
    %c2 = arith.constant 2 : index
    %14 = vector.load %arg8[%c0_15, %c2] : memref<32x290xf32, #tpu.memory_space<vmem>>, vector<32x256xf32>
    %c64 = arith.constant 64 : index
    %c0_16 = arith.constant 0 : index
    %15 = vector.load %arg9[%c64, %c0_16] : memref<288x256xf32, #tpu.memory_space<vmem>>, vector<32x256xf32>
    tpu.vector_store %arg9[%c64, %c0_16], %14 {strides = array<i32>} : memref<288x256xf32, #tpu.memory_space<vmem>>, vector<32x256xf32>,
    %c0_17 = arith.constant 0 : index
    %c16 = arith.constant 16 : index
    %16 = vector.load %arg8[%c0_17, %c16] : memref<32x290xf32, #tpu.memory_space<vmem>>, vector<32x256xf32>
    %c96 = arith.constant 96 : index
    %c0_18 = arith.constant 0 : index
    %17 = vector.load %arg9[%c96, %c0_18] : memref<288x256xf32, #tpu.memory_space<vmem>>, vector<32x256xf32>
    tpu.vector_store %arg9[%c96, %c0_18], %16 {strides = array<i32>} : memref<288x256xf32, #tpu.memory_space<vmem>>, vector<32x256xf32>,
    %c0_19 = arith.constant 0 : index
    %c17 = arith.constant 17 : index
    %18 = vector.load %arg8[%c0_19, %c17] : memref<32x290xf32, #tpu.memory_space<vmem>>, vector<32x256xf32>
    %c128 = arith.constant 128 : index
    %c0_20 = arith.constant 0 : index
    %19 = vector.load %arg9[%c128, %c0_20] : memref<288x256xf32, #tpu.memory_space<vmem>>, vector<32x256xf32>
    tpu.vector_store %arg9[%c128, %c0_20], %18 {strides = array<i32>} : memref<288x256xf32, #tpu.memory_space<vmem>>, vector<32x256xf32>,
    %c0_21 = arith.constant 0 : index
    %c18 = arith.constant 18 : index
    %20 = vector.load %arg8[%c0_21, %c18] : memref<32x290xf32, #tpu.memory_space<vmem>>, vector<32x256xf32>
    %c160 = arith.constant 160 : index
    %c0_22 = arith.constant 0 : index
    %21 = vector.load %arg9[%c160, %c0_22] : memref<288x256xf32, #tpu.memory_space<vmem>>, vector<32x256xf32>
    tpu.vector_store %arg9[%c160, %c0_22], %20 {strides = array<i32>} : memref<288x256xf32, #tpu.memory_space<vmem>>, vector<32x256xf32>,
    %c0_23 = arith.constant 0 : index
    %c32_24 = arith.constant 32 : index
    %22 = vector.load %arg8[%c0_23, %c32_24] : memref<32x290xf32, #tpu.memory_space<vmem>>, vector<32x256xf32>
    %c192 = arith.constant 192 : index
    %c0_25 = arith.constant 0 : index
    %23 = vector.load %arg9[%c192, %c0_25] : memref<288x256xf32, #tpu.memory_space<vmem>>, vector<32x256xf32>
    tpu.vector_store %arg9[%c192, %c0_25], %22 {strides = array<i32>} : memref<288x256xf32, #tpu.memory_space<vmem>>, vector<32x256xf32>,
    %c0_26 = arith.constant 0 : index
    %c33 = arith.constant 33 : index
    %24 = vector.load %arg8[%c0_26, %c33] : memref<32x290xf32, #tpu.memory_space<vmem>>, vector<32x256xf32>
    %c224 = arith.constant 224 : index
    %c0_27 = arith.constant 0 : index
    %25 = vector.load %arg9[%c224, %c0_27] : memref<288x256xf32, #tpu.memory_space<vmem>>, vector<32x256xf32>
    tpu.vector_store %arg9[%c224, %c0_27], %24 {strides = array<i32>} : memref<288x256xf32, #tpu.memory_space<vmem>>, vector<32x256xf32>,
    %c0_28 = arith.constant 0 : index
    %c34 = arith.constant 34 : index
    %26 = vector.load %arg8[%c0_28, %c34] : memref<32x290xf32, #tpu.memory_space<vmem>>, vector<32x256xf32>
    %c256 = arith.constant 256 : index
    %c0_29 = arith.constant 0 : index
    %27 = vector.load %arg9[%c256, %c0_29] : memref<288x256xf32, #tpu.memory_space<vmem>>, vector<32x256xf32>
    tpu.vector_store %arg9[%c256, %c0_29], %26 {strides = array<i32>} : memref<288x256xf32, #tpu.memory_space<vmem>>, vector<32x256xf32>,
    %c0_30 = arith.constant 0 : index
    %c0_31 = arith.constant 0 : index
    %28 = vector.load %arg4[%c0_30, %c0_31] : memref<32x288xf32, #tpu.memory_space<vmem>>, vector<32x288xf32>
    %c0_32 = arith.constant 0 : index
    %c0_33 = arith.constant 0 : index
    %29 = vector.load %arg9[%c0_32, %c0_33] : memref<288x256xf32, #tpu.memory_space<vmem>>, vector<288x256xf32>
    %cst_34 = arith.constant dense<0.000000e+00> : vector<32x256xf32>
    %30 = tpu.matmul %28, %29, %cst_34 {dimension_numbers = #tpu.dot_dimension_numbers<[1], [0], [0], [1], [0, 0, 1, 1], [], []>} : vector<32x288xf32>, vector<288x256xf32>, vector<32x256xf32> -> vector<32x256xf32>
    %c0_35 = arith.constant 0 : index
    %c0_36 = arith.constant 0 : index
    %31 = vector.load %arg5[%c0_35, %c0_36] : memref<32x1xf32, #tpu.memory_space<vmem>>, vector<32x1xf32>
    %32 = vector.broadcast %31 : vector<32x1xf32> to vector<32x256xf32>
    %33 = arith.addf %30, %32 : vector<32x256xf32>
    %c0_37 = arith.constant 0 : index
    %c0_38 = arith.constant 0 : index
    %34 = vector.load %arg6[%c0_37, %c0_38] : memref<32x32xf32, #tpu.memory_space<vmem>>, vector<32x32xf32>
    %35 = arith.mulf %33, %33 : vector<32x256xf32>
    %cst_39 = arith.constant dense<0.000000e+00> : vector<32x256xf32>
    %36 = tpu.matmul %34, %35, %cst_39 {dimension_numbers = #tpu.dot_dimension_numbers<[1], [0], [0], [1], [0, 0, 1, 1], [], []>} : vector<32x32xf32>, vector<32x256xf32>, vector<32x256xf32> -> vector<32x256xf32>
    %cst_40 = arith.constant 2.000000e-05 : f32
    %37 = vector.broadcast %cst_40 : f32 to vector<32x256xf32>
    %38 = arith.mulf %37, %36 : vector<32x256xf32>
    %cst_41 = arith.constant 1.000000e+00 : f32
    %39 = vector.broadcast %cst_41 : f32 to vector<32x256xf32>
    %40 = arith.addf %39, %38 : vector<32x256xf32>
    %41 = math.rsqrt %40 : vector<32x256xf32>
    %42 = math.sqrt %41 : vector<32x256xf32>
    %43 = arith.mulf %41, %42 : vector<32x256xf32>
    %44 = arith.mulf %33, %43 : vector<32x256xf32>
    %c0_42 = arith.constant 0 : index
    %c0_43 = arith.constant 0 : index
    %c0_44 = arith.constant 0 : index
    %45 = vector.load %arg7[%c0_42, %c0_43, %c0_44] : memref<1x32x256xf32, #tpu.memory_space<vmem>>, vector<1x32x256xf32>
    %46 = vector.shape_cast %45 : vector<1x32x256xf32> to vector<32x256xf32>
    %47 = vector.shape_cast %44 : vector<32x256xf32> to vector<1x32x256xf32>
    tpu.vector_store %arg7[%c0_42, %c0_43, %c0_44], %47 {strides = array<i32>} : memref<1x32x256xf32, #tpu.memory_space<vmem>>, vector<1x32x256xf32>,
    return
  }
  func.func @transform_0(%arg0: i32) -> (i32, i32, i32) {
    %c0_i32 = arith.constant 0 : i32
    %c0_i32_0 = arith.constant 0 : i32
    %c0_i32_1 = arith.constant 0 : i32
    return %arg0, %c0_i32, %c0_i32_0 : i32, i32, i32
  }
  func.func @transform_1(%arg0: i32) -> (i32, i32) {
    %c0_i32 = arith.constant 0 : i32
    %c0_i32_0 = arith.constant 0 : i32
    %c0_i32_1 = arith.constant 0 : i32
    return %c0_i32, %c0_i32_0 : i32, i32
  }
  func.func @transform_2(%arg0: i32) -> (i32, i32) {
    %c0_i32 = arith.constant 0 : i32
    %c0_i32_0 = arith.constant 0 : i32
    %c0_i32_1 = arith.constant 0 : i32
    return %c0_i32, %c0_i32_0 : i32, i32
  }
  func.func @transform_3(%arg0: i32) -> (i32, i32) {
    %c0_i32 = arith.constant 0 : i32
    %c0_i32_0 = arith.constant 0 : i32
    %c0_i32_1 = arith.constant 0 : i32
    return %c0_i32, %c0_i32_0 : i32, i32
  }
  func.func @transform_4(%arg0: i32) -> (i32, i32) {
    %c0_i32 = arith.constant 0 : i32
    %c0_i32_0 = arith.constant 0 : i32
    %c0_i32_1 = arith.constant 0 : i32
    return %c0_i32, %c0_i32_0 : i32, i32
  }
  func.func @transform_5(%arg0: i32) -> (i32, i32) {
    %c0_i32 = arith.constant 0 : i32
    %c0_i32_0 = arith.constant 0 : i32
    %c0_i32_1 = arith.constant 0 : i32
    return %c0_i32, %c0_i32_0 : i32, i32
  }
  func.func @transform_6(%arg0: i32) -> (i32, i32, i32) {
    %c0_i32 = arith.constant 0 : i32
    %c0_i32_0 = arith.constant 0 : i32
    %c0_i32_1 = arith.constant 0 : i32
    return %arg0, %c0_i32, %c0_i32_0 : i32, i32, i32
  }
}

</mosaic_0001>

<llo_original>
// kernel: dcfnet_feature_forward.1
$region0: #{dcfnet_feature_forward.1}
  #allocation0 [shape = 'u32[]', space=smem, size = 0x4, offset = 0x4, fixed_abs, tag = 'smem constant byte address 0x4 - core index']
  #allocation1 [shape = 'u32[144,128]{1,0:T(1,128)}', space=vmem, size = 0x12000, scoped, tag = 'internal scratch']
  #allocation2 [shape = 'f32[32,290]{1,0:T(8,128)}', space=vmem, size = 0xc000, scoped, tag = 'scratch operand']
  #allocation3 [shape = 'f32[288,256]{1,0:T(8,128)}', space=vmem, size = 0x48000, scoped, tag = 'scratch operand']
  %s0 = inlined_call_operand.vmem [shape: f32[2,27,290], index: 0, kind: input, shape index: {}]
  %s1 = inlined_call_operand.vmem [shape: f32[32,27], index: 1, kind: input, shape index: {}]
  %s2 = inlined_call_operand.vmem [shape: f32[32,1], index: 2, kind: input, shape index: {}]
  %s3 = inlined_call_operand.vmem [shape: f32[32,288], index: 3, kind: input, shape index: {}]
  %s4 = inlined_call_operand.vmem [shape: f32[32,1], index: 4, kind: input, shape index: {}]
  %s5 = inlined_call_operand.vmem [shape: f32[32,32], index: 5, kind: input, shape index: {}]
  %s6 = inlined_call_operand.vmem [shape: f32[2,32,256], index: 6, kind: output, shape index: {}]
  %s7 = sld [smem:[#allocation0]]
  $region57: #{dcfnet_feature_forward.1} parent=0
    _
  %s9 = ssub.s32 1, %s7
  %s10 = scalar_select 0, %s9, %s7
  loop: start=0, step=1, limit=4
  $region2: #{dcfnet_feature_forward.1} parent=0 // loop_pre_header
    _
  $region3: #{dcfnet_feature_forward.1} parent=0 // loop_header
    %s12 = sphi 0, %s16
    %p13 = scmp.ge.s32.totalorder %s12, 4
    %s22 = sphi 0, %s24
    %s25 = sphi 0, %s22
    %s26 = sphi 0, %s25
    %s42 = sphi 0, %s26
    %s46 = sphi 0, %s46
    %s48 = sphi 0, %s46
    %s49 = sphi 0, %s48
    %s63 = sphi 0, %s49
    %s67 = sphi 0, %s67
    %s69 = sphi 0, %s67
    %s70 = sphi 0, %s69
    %s84 = sphi 0, %s70
    %s88 = sphi 0, %s88
    %s90 = sphi 0, %s88
    %s91 = sphi 0, %s90
    %s105 = sphi 0, %s91
    %s109 = sphi 0, %s109
    %s111 = sphi 0, %s109
    %s112 = sphi 0, %s111
    %s126 = sphi 0, %s112
    %s130 = sphi 0, %s130
    %s132 = sphi 0, %s130
    %s133 = sphi 0, %s132
    %s147 = sphi 0, %s133
    %s153 = sphi 0, %s155
    %s156 = sphi 0, %s153
    %s157 = sphi 0, %s156
    %s173 = sphi 0, %s157
  $region4: #{dcfnet_feature_forward.1} parent=0 // loop_header_branch
    %15 = sbr.rel (%p13) target = $region8
  $region5: #{dcfnet_feature_forward.1} parent=0 // loop_body
    %s17 = ssub.s32 %s12, 1
    %s18 = ssub.s32 %s12, 2
    %s19 = sadd.s32 %s12, 1
    %s20 = ssub.s32 %s12, %s19
    %p21 = scmp.eq.s32.totalorder %s20, 0
    %s23 = sadd.s32 %s22, 1
    %s24 = scalar_select %p21, %s22, %s23
    %p27 = pneg %p21
    %p28 = scmp.eq.s32.totalorder %s12, 1
    %p29 = por %p27, %p28
    %p30 = scmp.ne.s32.totalorder %s22, %s25
    %p31 = scmp.eq.s32.totalorder %s12, 0
    %p32 = por %p30, %p31
    %p33 = scmp.ne.s32.totalorder %s22, %s25
    %p34 = scmp.eq.s32.totalorder %s17, 1
    %p35 = por %p33, %p34
    %p36 = scmp.ne.s32.totalorder %s25, %s26
    %p37 = scmp.eq.s32.totalorder %s17, 0
    %p38 = por %p36, %p37
    %p39 = scmp.ne.s32.totalorder %s25, %s26
    %p40 = scmp.eq.s32.totalorder %s18, 1
    %p41 = por %p39, %p40
    %p43 = scmp.ne.s32.totalorder %s26, %s42
    %p44 = scmp.eq.s32.totalorder %s18, 0
    %p45 = por %p43, %p44
    %s47 = sadd.s32 %s46, 1
    %p50 = scmp.eq.s32.totalorder %s12, 1
    %p51 = scmp.ne.s32.totalorder %s46, %s48
    %p52 = scmp.eq.s32.totalorder %s12, 0
    %p53 = por %p51, %p52
    %p54 = scmp.ne.s32.totalorder %s46, %s48
    %p55 = scmp.eq.s32.totalorder %s17, 1
    %p56 = por %p54, %p55
    %p57 = scmp.ne.s32.totalorder %s48, %s49
    %p58 = scmp.eq.s32.totalorder %s17, 0
    %p59 = por %p57, %p58
    %p60 = scmp.ne.s32.totalorder %s48, %s49
    %p61 = scmp.eq.s32.totalorder %s18, 1
    %p62 = por %p60, %p61
    %p64 = scmp.ne.s32.totalorder %s49, %s63
    %p65 = scmp.eq.s32.totalorder %s18, 0
    %p66 = por %p64, %p65
    %s68 = sadd.s32 %s67, 1
    %p71 = scmp.eq.s32.totalorder %s12, 1
    %p72 = scmp.ne.s32.totalorder %s67, %s69
    %p73 = scmp.eq.s32.totalorder %s12, 0
    %p74 = por %p72, %p73
    %p75 = scmp.ne.s32.totalorder %s67, %s69
    %p76 = scmp.eq.s32.totalorder %s17, 1
    %p77 = por %p75, %p76
    %p78 = scmp.ne.s32.totalorder %s69, %s70
    %p79 = scmp.eq.s32.totalorder %s17, 0
    %p80 = por %p78, %p79
    %p81 = scmp.ne.s32.totalorder %s69, %s70
    %p82 = scmp.eq.s32.totalorder %s18, 1
    %p83 = por %p81, %p82
    %p85 = scmp.ne.s32.totalorder %s70, %s84
    %p86 = scmp.eq.s32.totalorder %s18, 0
    %p87 = por %p85, %p86
    %s89 = sadd.s32 %s88, 1
    %p92 = scmp.eq.s32.totalorder %s12, 1
    %p93 = scmp.ne.s32.totalorder %s88, %s90
    %p94 = scmp.eq.s32.totalorder %s12, 0
    %p95 = por %p93, %p94
    %p96 = scmp.ne.s32.totalorder %s88, %s90
    %p97 = scmp.eq.s32.totalorder %s17, 1
    %p98 = por %p96, %p97
    %p99 = scmp.ne.s32.totalorder %s90, %s91
    %p100 = scmp.eq.s32.totalorder %s17, 0
    %p101 = por %p99, %p100
    %p102 = scmp.ne.s32.totalorder %s90, %s91
    %p103 = scmp.eq.s32.totalorder %s18, 1
    %p104 = por %p102, %p103
    %p106 = scmp.ne.s32.totalorder %s91, %s105
    %p107 = scmp.eq.s32.totalorder %s18, 0
    %p108 = por %p106, %p107
    %s110 = sadd.s32 %s109, 1
    %p113 = scmp.eq.s32.totalorder %s12, 1
    %p114 = scmp.ne.s32.totalorder %s109, %s111
    %p115 = scmp.eq.s32.totalorder %s12, 0
    %p116 = por %p114, %p115
    %p117 = scmp.ne.s32.totalorder %s109, %s111
    %p118 = scmp.eq.s32.totalorder %s17, 1
    %p119 = por %p117, %p118
    %p120 = scmp.ne.s32.totalorder %s111, %s112
    %p121 = scmp.eq.s32.totalorder %s17, 0
    %p122 = por %p120, %p121
    %p123 = scmp.ne.s32.totalorder %s111, %s112
    %p124 = scmp.eq.s32.totalorder %s18, 1
    %p125 = por %p123, %p124
    %p127 = scmp.ne.s32.totalorder %s112, %s126
    %p128 = scmp.eq.s32.totalorder %s18, 0
    %p129 = por %p127, %p128
    %s131 = sadd.s32 %s130, 1
    %p134 = scmp.eq.s32.totalorder %s12, 1
    %p135 = scmp.ne.s32.totalorder %s130, %s132
    %p136 = scmp.eq.s32.totalorder %s12, 0
    %p137 = por %p135, %p136
    %p138 = scmp.ne.s32.totalorder %s130, %s132
    %p139 = scmp.eq.s32.totalorder %s17, 1
    %p140 = por %p138, %p139
    %p141 = scmp.ne.s32.totalorder %s132, %s133
    %p142 = scmp.eq.s32.totalorder %s17, 0
    %p143 = por %p141, %p142
    %p144 = scmp.ne.s32.totalorder %s132, %s133
    %p145 = scmp.eq.s32.totalorder %s18, 1
    %p146 = por %p144, %p145
    %p148 = scmp.ne.s32.totalorder %s133, %s147
    %p149 = scmp.eq.s32.totalorder %s18, 0
    %p150 = por %p148, %p149
    %s151 = ssub.s32 %s12, %s19
    %p152 = scmp.eq.s32.totalorder %s151, 0
    %s154 = sadd.s32 %s153, 1
    %s155 = scalar_select %p152, %s153, %s154
    %p158 = pneg %p152
    %p159 = scmp.eq.s32.totalorder %s12, 1
    %p160 = por %p158, %p159
    %p161 = scmp.ne.s32.totalorder %s153, %s156
    %p162 = scmp.eq.s32.totalorder %s12, 0
    %p163 = por %p161, %p162
    %p164 = scmp.ne.s32.totalorder %s153, %s156
    %p165 = scmp.eq.s32.totalorder %s17, 1
    %p166 = por %p164, %p165
    %p167 = scmp.ne.s32.totalorder %s156, %s157
    %p168 = scmp.eq.s32.totalorder %s17, 0
    %p169 = por %p167, %p168
    %p170 = scmp.ne.s32.totalorder %s156, %s157
    %p171 = scmp.eq.s32.totalorder %s18, 1
    %p172 = por %p170, %p171
    %p174 = scmp.ne.s32.totalorder %s157, %s173
    %p175 = scmp.eq.s32.totalorder %s18, 0
    %p176 = por %p174, %p175
    %p177 = scmp.le.s32.totalorder 1, %s12
    %p178 = scmp.lt.s32.totalorder %s12, 3
    %p179 = pnand %p177, %p178
    %p180 = pneg %p179
    // Predicated region
    $region9: #{dcfnet_feature_forward.1} parent=5 // pred_check
      _
    $region10: #{dcfnet_feature_forward.1} parent=5 // pred_check_branch
      %182 = sbr.rel (%p179) target = $region12
    $region11: #{dcfnet_feature_forward.1} parent=5 // pred_region
      %s183 = ssub.s32 %s12, 1
      // Predicated region
      $region13: #{dcfnet_feature_forward.1} parent=11 // pred_check
        %p184 = pneg %p59
      $region14: #{dcfnet_feature_forward.1} parent=11 // pred_check_branch
        %186 = sbr.rel (%p184) target = $region16
      $region15: #{dcfnet_feature_forward.1} parent=11 // pred_region
        _
      $region16: #{dcfnet_feature_forward.1} parent=11 // pred_fallthru
        _
      // Predicated region
      $region17: #{dcfnet_feature_forward.1} parent=11 // pred_check
        %p187 = pneg %p80
      $region18: #{dcfnet_feature_forward.1} parent=11 // pred_check_branch
        %189 = sbr.rel (%p187) target = $region20
      $region19: #{dcfnet_feature_forward.1} parent=11 // pred_region
        _
      $region20: #{dcfnet_feature_forward.1} parent=11 // pred_fallthru
        _
      // Predicated region
      $region21: #{dcfnet_feature_forward.1} parent=11 // pred_check
        %p190 = pneg %p101
      $region22: #{dcfnet_feature_forward.1} parent=11 // pred_check_branch
        %192 = sbr.rel (%p190) target = $region24
      $region23: #{dcfnet_feature_forward.1} parent=11 // pred_region
        _
      $region24: #{dcfnet_feature_forward.1} parent=11 // pred_fallthru
        _
      // Predicated region
      $region25: #{dcfnet_feature_forward.1} parent=11 // pred_check
        %p193 = pneg %p122
      $region26: #{dcfnet_feature_forward.1} parent=11 // pred_check_branch
        %195 = sbr.rel (%p193) target = $region28
      $region27: #{dcfnet_feature_forward.1} parent=11 // pred_region
        _
      $region28: #{dcfnet_feature_forward.1} parent=11 // pred_fallthru
        _
      // Predicated region
      $region29: #{dcfnet_feature_forward.1} parent=11 // pred_check
        %p196 = pneg %p143
      $region30: #{dcfnet_feature_forward.1} parent=11 // pred_check_branch
        %198 = sbr.rel (%p196) target = $region32
      $region31: #{dcfnet_feature_forward.1} parent=11 // pred_region
        _
      $region32: #{dcfnet_feature_forward.1} parent=11 // pred_fallthru
        _
    $region12: #{dcfnet_feature_forward.1} parent=5 // pred_fallthru
      _
    %p199 = scmp.lt.s32.totalorder %s12, 2
    // Predicated region
    $region33: #{dcfnet_feature_forward.1} parent=5 // pred_check
      %p200 = pneg %p199
    $region34: #{dcfnet_feature_forward.1} parent=5 // pred_check_branch
      %202 = sbr.rel (%p200) target = $region36
    $region35: #{dcfnet_feature_forward.1} parent=5 // pred_region
      // Predicated region
      $region37: #{dcfnet_feature_forward.1} parent=35 // pred_check
        %p203 = pneg %p32
      $region38: #{dcfnet_feature_forward.1} parent=35 // pred_check_branch
        %205 = sbr.rel (%p203) target = $region40
      $region39: #{dcfnet_feature_forward.1} parent=35 // pred_region
        %p206 = scmp.lt.s32.totalorder %s12, 1
        %s207 = scalar_select %p206, %s12, 1
        %s208 = smul.addr %s207, 12
        %s209 = smul.addr %s208, 8
        %s210 = scalar_lea.vmem %s0, %s209
      $region40: #{dcfnet_feature_forward.1} parent=35 // pred_fallthru
        _
    $region36: #{dcfnet_feature_forward.1} parent=5 // pred_fallthru
      _
    %p211 = scmp.le.s32.totalorder 1, %s12
    %p212 = scmp.lt.s32.totalorder %s12, 3
    %p213 = pnand %p211, %p212
    %p214 = pneg %p213
    // Predicated region
    $region41: #{dcfnet_feature_forward.1} parent=5 // pred_check
      _
    $region42: #{dcfnet_feature_forward.1} parent=5 // pred_check_branch
      %216 = sbr.rel (%p213) target = $region44
    $region43: #{dcfnet_feature_forward.1} parent=5 // pred_region
      %s217 = ssub.s32 %s12, 1
      %p218 = scmp.lt.s32.totalorder %s17, 1
      %s219 = scalar_select %p218, %s17, 1
      %s220 = smul.addr %s219, 12
      %s221 = smul.addr %s220, 8
      %s222 = scalar_lea.vmem %s0, %s221
      %p223 = pneg %p38
      %p224 = pneg %p35
      %p225 = pneg %p59
      %p226 = pneg %p56
      %p227 = pneg %p80
      %p228 = pneg %p77
      %p229 = pneg %p101
      %p230 = pneg %p98
      %p231 = pneg %p122
      %p232 = pneg %p119
      %p233 = pneg %p143
      %p234 = pneg %p140
      %p235 = pneg %p169
      %p236 = pneg %p166
      %p237 = scmp.lt.s32.totalorder %s17, 1
      %s238 = scalar_select %p237, %s17, 1
      %s239 = smul.addr %s238, 8
      %s240 = smul.addr %s239, 8
      %s241 = scalar_lea.vmem %s6, %s240
      %p242 = scmp.lt.s32.totalorder %s17, 1
      %s243 = scalar_select %p242, %s17, 1
      %s244 = smul.addr %s243, 12
      %s245 = smul.addr %s244, 8
      %s246 = scalar_lea.vmem %s0, %s245
      %p247 = scmp.lt.s32.totalorder %s17, 1
      %s248 = scalar_select %p247, %s17, 1
      %s249 = smul.addr %s248, 8
      %s250 = smul.addr %s249, 8
      %s251 = scalar_lea.vmem %s6, %s250
      %v252 = vld [vmem:[%s1] sm:$0xff]
      %v253 = vld [vmem:[%s1 + $0x8] sm:$0xff]
      %v254 = vld [vmem:[%s1 + $0x10] sm:$0xff]
      %v255 = vld [vmem:[%s1 + $0x18] sm:$0xff]
      %v256 = vld [vmem:[%s246] sm:$0xff]
      %v257 = vld [vmem:[%s246 + $0x8] sm:$0xff]
      %v258 = vld [vmem:[%s246 + $0x10] sm:$0xff]
      %v259 = vld [vmem:[%s246 + $0x18] sm:$0xff]
      %v260 = vld [vmem:[%s246 + $0x20] sm:$0xff]
      %v261 = vld [vmem:[%s246 + $0x28] sm:$0xff]
      %v262 = vld [vmem:[%s246 + $0x30] sm:$0xff]
      %v263 = vld [vmem:[%s246 + $0x38] sm:$0xff]
      %v264 = vld [vmem:[%s246 + $0x40] sm:$0xff]
      %v265 = vld [vmem:[%s246 + $0x48] sm:$0x7]
      %v266 = vld [vmem:[%s246 + $0x50] sm:$0x7]
      %v267 = vld [vmem:[%s246 + $0x58] sm:$0x7]
      %v268 = vld [vmem:[%s2] sm:$0xff]
      %v269 = vld [vmem:[%s2 + $0x8] sm:$0xff]
      %v270 = vld [vmem:[%s2 + $0x10] sm:$0xff]
      %v271 = vld [vmem:[%s2 + $0x18] sm:$0xff]
      %273 = vset.pattern.permute.xlu0 0
      %274 = vperm.xlu0 %273, %v268
      %v275 = vpop.permute.xlu0 %274
      %278 = vset.pattern.permute.xlu0 0
      %279 = vperm.xlu0 %278, %v269
      %v280 = vpop.permute.xlu0 %279
      %283 = vset.pattern.permute.xlu0 0
      %284 = vperm.xlu0 %283, %v270
      %v285 = vpop.permute.xlu0 %284
      %288 = vset.pattern.permute.xlu0 0
      %289 = vperm.xlu0 %288, %v271
      %v290 = vpop.permute.xlu0 %289
      %vm292 = vcmask 220160
      %v294 = vsel %vm292, %v252, 0
      %v297 = vsel %vm292, %v253, 0
      %v300 = vsel %vm292, %v254, 0
      %v303 = vsel %vm292, %v255, 0
      %vm305 = vcmask 1042432
      %v307 = vsel %vm305, %v265, 0
      %v310 = vsel %vm305, %v266, 0
      %v313 = vsel %vm305, %v267, 0
      %315 = vmatprep.subr.mxu0 %v257
      %316 = vmatpush1.msra.mxu0 %v256
      %317 = vmatprep.subr.mxu0 %v260
      %318 = vmatpush1.msra.mxu0 %v259
      %319 = vmatprep.subr.mxu0 %v263
      %320 = vmatpush1.msra.mxu0 %v262
      %321 = vmatprep.subr.mxu0 %v310
      %322 = vmatpush1.msra.mxu0 %v307
      %323 = vmatprep.subr.mxu0 0.0
      %324 = vmatpush1.msra.mxu0 0.0
      %325 = vmatprep.subr.mxu0 0.0
      %326 = vmatpush1.msra.mxu0 0.0
      %327 = vmatprep.subr.mxu0 0.0
      %328 = vmatpush1.msra.mxu0 0.0
      %329 = vmatprep.subr.mxu0 0.0
      %330 = vmatpush1.msra.mxu0 0.0
      %331 = vmatprep.subr.mxu0 0.0
      %332 = vmatpush1.msra.mxu0 0.0
      %333 = vmatprep.subr.mxu0 0.0
      %334 = vmatpush1.msra.mxu0 0.0
      %335 = vmatprep.subr.mxu0 0.0
      %336 = vmatpush1.msra.mxu0 0.0
      %337 = vmatprep.subr.mxu0 0.0
      %338 = vmatpush1.msra.mxu0 0.0
      %339 = vmatprep.subr.mxu0 0.0
      %340 = vmatpush1.msra.mxu0 0.0
      %341 = vmatprep.subr.mxu0 0.0
      %342 = vmatpush1.msra.mxu0 0.0
      %343 = vmatprep.subr.mxu0 0.0
      %344 = vmatpush1.msra.mxu0 0.0
      %345 = vmatprep.subr.mxu0 0.0
      %346 = vmatpush1.msra.mxu0 0.0
      %347 = vmatprep.subr.mxu0 0.0
      %348 = vmatpush1.msra.mxu0 0.0
      %349 = vmatprep.subr.mxu0 0.0
      %350 = vmatpush1.msra.mxu0 0.0
      %351 = vmatprep.subr.mxu0 0.0
      %352 = vmatpush1.msra.mxu0 0.0
      %353 = vmatprep.subr.mxu0 0.0
      %354 = vmatpush1.msra.mxu0 0.0
      %355 = vmatprep.subr.mxu0 0.0
      %356 = vmatpush1.msra.mxu0 0.0
      %357 = vmatprep.subr.mxu0 0.0
      %358 = vmatpush1.msra.mxu0 0.0
      %359 = vmatprep.subr.mxu0 0.0
      %360 = vmatpush1.msra.mxu0 0.0
      %361 = vmatprep.subr.mxu0 0.0
      %362 = vmatpush1.msra.mxu0 0.0
      %363 = vmatprep.subr.mxu0 0.0
      %364 = vmatpush1.msra.mxu0 0.0
      %365 = vmatprep.subr.mxu0 0.0
      %366 = vmatpush1.msra.mxu0 0.0
      %367 = vmatprep.subr.mxu0 0.0
      %368 = vmatpush1.msra.mxu0 0.0
      %369 = vmatprep.subr.mxu0 0.0
      %370 = vmatpush1.msra.mxu0 0.0
      %371 = vmatprep.subr.mxu0 0.0
      %372 = vmatpush1.msra.mxu0 0.0
      %373 = vmatprep.subr.mxu0 0.0
      %374 = vmatpush1.msra.mxu0 0.0
      %375 = vmatprep.subr.mxu0 0.0
      %376 = vmatpush1.msra.mxu0 0.0
      %377 = vmatprep.subr.mxu0 0.0
      %378 = vmatpush1.msra.mxu0 0.0
      %379 = vmatprep.mubr.f32.mxu0 0.0
      %380 = vmatmul.mubr.f32.gmra.mrb[0].mxu0 %v294
      %v381 = vpop.f32.mrb[0].mxu0
      %v382 = vadd.f32 %v275, %v381
      %v383 = vpop.f32.mrb[0].mxu0
      %v384 = vadd.f32 %v275, %v383
      %385 = vmatprep.mubr.f32.mxu0 0.0
      %386 = vmatmul.mubr.f32.gmra.mrb[0].mxu0 %v297
      %v387 = vpop.f32.mrb[0].mxu0
      %v388 = vadd.f32 %v280, %v387
      %v389 = vpop.f32.mrb[0].mxu0
      %v390 = vadd.f32 %v280, %v389
      %391 = vmatprep.mubr.f32.mxu0 0.0
      %392 = vmatmul.mubr.f32.gmra.mrb[0].mxu0 %v300
      %v393 = vpop.f32.mrb[0].mxu0
      %v394 = vadd.f32 %v285, %v393
      %v395 = vpop.f32.mrb[0].mxu0
      %v396 = vadd.f32 %v285, %v395
      %397 = vmatprep.mubr.f32.mxu0 0.0
      %398 = vmatmul.mubr.f32.gmra.mrb[0].mxu0 %v303
      %v399 = vpop.f32.mrb[0].mxu0
      %v400 = vadd.f32 %v290, %v399
      %v401 = vpop.f32.mrb[0].mxu0
      %v402 = vadd.f32 %v290, %v401
      %403 = vdwg.mxu0
      %404 = vmatprep.subr.mxu0 0.0
      %405 = vmatpush1.msra.mxu0 %v258
      %406 = vmatprep.subr.mxu0 0.0
      %407 = vmatpush1.msra.mxu0 %v261
      %408 = vmatprep.subr.mxu0 0.0
      %409 = vmatpush1.msra.mxu0 %v264
      %410 = vmatprep.subr.mxu0 0.0
      %411 = vmatpush1.msra.mxu0 %v313
      %412 = vmatprep.subr.mxu0 0.0
      %413 = vmatpush1.msra.mxu0 0.0
      %414 = vmatprep.subr.mxu0 0.0
      %415 = vmatpush1.msra.mxu0 0.0
      %416 = vmatprep.subr.mxu0 0.0
      %417 = vmatpush1.msra.mxu0 0.0
      %418 = vmatprep.subr.mxu0 0.0
      %419 = vmatpush1.msra.mxu0 0.0
      %420 = vmatprep.subr.mxu0 0.0
      %421 = vmatpush1.msra.mxu0 0.0
      %422 = vmatprep.subr.mxu0 0.0
      %423 = vmatpush1.msra.mxu0 0.0
      %424 = vmatprep.subr.mxu0 0.0
      %425 = vmatpush1.msra.mxu0 0.0
      %426 = vmatprep.subr.mxu0 0.0
      %427 = vmatpush1.msra.mxu0 0.0
      %428 = vmatprep.subr.mxu0 0.0
      %429 = vmatpush1.msra.mxu0 0.0
      %430 = vmatprep.subr.mxu0 0.0
      %431 = vmatpush1.msra.mxu0 0.0
      %432 = vmatprep.subr.mxu0 0.0
      %433 = vmatpush1.msra.mxu0 0.0
      %434 = vmatprep.subr.mxu0 0.0
      %435 = vmatpush1.msra.mxu0 0.0
      %436 = vmatprep.subr.mxu0 0.0
      %437 = vmatpush1.msra.mxu0 0.0
      %438 = vmatprep.subr.mxu0 0.0
      %439 = vmatpush1.msra.mxu0 0.0
      %440 = vmatprep.subr.mxu0 0.0
      %441 = vmatpush1.msra.mxu0 0.0
      %442 = vmatprep.subr.mxu0 0.0
      %443 = vmatpush1.msra.mxu0 0.0
      %444 = vmatprep.subr.mxu0 0.0
      %445 = vmatpush1.msra.mxu0 0.0
      %446 = vmatprep.subr.mxu0 0.0
      %447 = vmatpush1.msra.mxu0 0.0
      %448 = vmatprep.subr.mxu0 0.0
      %449 = vmatpush1.msra.mxu0 0.0
      %450 = vmatprep.subr.mxu0 0.0
      %451 = vmatpush1.msra.mxu0 0.0
      %452 = vmatprep.subr.mxu0 0.0
      %453 = vmatpush1.msra.mxu0 0.0
      %454 = vmatprep.subr.mxu0 0.0
      %455 = vmatpush1.msra.mxu0 0.0
      %456 = vmatprep.subr.mxu0 0.0
      %457 = vmatpush1.msra.mxu0 0.0
      %458 = vmatprep.subr.mxu0 0.0
      %459 = vmatpush1.msra.mxu0 0.0
      %460 = vmatprep.subr.mxu0 0.0
      %461 = vmatpush1.msra.mxu0 0.0
      %462 = vmatprep.subr.mxu0 0.0
      %463 = vmatpush1.msra.mxu0 0.0
      %464 = vmatprep.subr.mxu0 0.0
      %465 = vmatpush1.msra.mxu0 0.0
      %466 = vmatprep.subr.mxu0 0.0
      %467 = vmatpush1.msra.mxu0 0.0
      %468 = vmatprep.mubr.f32.mxu0 0.0
      %469 = vmatmul.mubr.f32.gmra.mrb[0].mxu0 %v294
      %v470 = vpop.f32.mrb[0].mxu0
      %v471 = vadd.f32 %v275, %v470
      %v472 = vpop.f32.mrb[0].mxu0
      %473 = vmatprep.mubr.f32.mxu0 0.0
      %474 = vmatmul.mubr.f32.gmra.mrb[0].mxu0 %v297
      %v475 = vpop.f32.mrb[0].mxu0
      %v476 = vadd.f32 %v280, %v475
      %v477 = vpop.f32.mrb[0].mxu0
      %478 = vmatprep.mubr.f32.mxu0 0.0
      %479 = vmatmul.mubr.f32.gmra.mrb[0].mxu0 %v300
      %v480 = vpop.f32.mrb[0].mxu0
      %v481 = vadd.f32 %v285, %v480
      %v482 = vpop.f32.mrb[0].mxu0
      %483 = vmatprep.mubr.f32.mxu0 0.0
      %484 = vmatmul.mubr.f32.gmra.mrb[0].mxu0 %v303
      %v485 = vpop.f32.mrb[0].mxu0
      %v486 = vadd.f32 %v290, %v485
      %v487 = vpop.f32.mrb[0].mxu0
      %488 = vdwg.mxu0
      %v489 = vmax.f32 %v382, 0.0
      %v490 = vmax.f32 %v384, 0.0
      %v491 = vmax.f32 %v471, 0.0
      %v492 = vmax.f32 %v388, 0.0
      %v493 = vmax.f32 %v390, 0.0
      %v494 = vmax.f32 %v476, 0.0
      %v495 = vmax.f32 %v394, 0.0
      %v496 = vmax.f32 %v396, 0.0
      %v497 = vmax.f32 %v481, 0.0
      %v498 = vmax.f32 %v400, 0.0
      %v499 = vmax.f32 %v402, 0.0
      %v500 = vmax.f32 %v486, 0.0
      %501 = vst [vmem:[#allocation2] sm:$0xff] %v489
      %502 = vst [vmem:[#allocation2 + $0x8] sm:$0xff] %v490
      %vm503 = vcmask 277504
      %504 = vst.msk [vmem:[#allocation2 + $0x10] sm:$0xff] %vm503, %v491
      %505 = vst [vmem:[#allocation2 + $0x18] sm:$0xff] %v492
      %506 = vst [vmem:[#allocation2 + $0x20] sm:$0xff] %v493
      %507 = vst.msk [vmem:[#allocation2 + $0x28] sm:$0xff] %vm503, %v494
      %508 = vst [vmem:[#allocation2 + $0x30] sm:$0xff] %v495
      %509 = vst [vmem:[#allocation2 + $0x38] sm:$0xff] %v496
      %510 = vst.msk [vmem:[#allocation2 + $0x40] sm:$0xff] %vm503, %v497
      %511 = vst [vmem:[#allocation2 + $0x48] sm:$0xff] %v498
      %512 = vst [vmem:[#allocation2 + $0x50] sm:$0xff] %v499
      %513 = vst.msk [vmem:[#allocation2 + $0x58] sm:$0xff] %vm503, %v500
      %v514 = vld [vmem:[#allocation2] sm:$0xff]
      %v515 = vld [vmem:[#allocation2 + $0x8] sm:$0xff]
      %v516 = vld [vmem:[#allocation2 + $0x18] sm:$0xff]
      %v517 = vld [vmem:[#allocation2 + $0x20] sm:$0xff]
      %v518 = vld [vmem:[#allocation2 + $0x30] sm:$0xff]
      %v519 = vld [vmem:[#allocation2 + $0x38] sm:$0xff]
      %v520 = vld [vmem:[#allocation2 + $0x48] sm:$0xff]
      %v521 = vld [vmem:[#allocation2 + $0x50] sm:$0xff]
      %522 = vst [vmem:[#allocation3] sm:$0xff] %v514
      %523 = vst [vmem:[#allocation3 + $0x8] sm:$0xff] %v515
      %524 = vst [vmem:[#allocation3 + $0x10] sm:$0xff] %v516
      %525 = vst [vmem:[#allocation3 + $0x18] sm:$0xff] %v517
      %526 = vst [vmem:[#allocation3 + $0x20] sm:$0xff] %v518
      %527 = vst [vmem:[#allocation3 + $0x28] sm:$0xff] %v519
      %528 = vst [vmem:[#allocation3 + $0x30] sm:$0xff] %v520
      %529 = vst [vmem:[#allocation3 + $0x38] sm:$0xff] %v521
      %v530 = vld [vmem:[#allocation2] sm:$0xff]
      %v531 = vld [vmem:[#allocation2 + $0x8] sm:$0xff]
      %v532 = vld [vmem:[#allocation2 + $0x10] sm:$0xff]
      %v533 = vld [vmem:[#allocation2 + $0x18] sm:$0xff]
      %v534 = vld [vmem:[#allocation2 + $0x20] sm:$0xff]
      %v535 = vld [vmem:[#allocation2 + $0x28] sm:$0xff]
      %v536 = vld [vmem:[#allocation2 + $0x30] sm:$0xff]
      %v537 = vld [vmem:[#allocation2 + $0x38] sm:$0xff]
      %v538 = vld [vmem:[#allocation2 + $0x40] sm:$0xff]
      %v539 = vld [vmem:[#allocation2 + $0x48] sm:$0xff]
      %v540 = vld [vmem:[#allocation2 + $0x50] sm:$0xff]
      %v541 = vld [vmem:[#allocation2 + $0x58] sm:$0xff]
      %554 = vrot.lane.b32.xlu0 %v530, 127
      %v555 = vpop.permute.xlu0 %554
      %556 = vrot.lane.b32.xlu0 %v531, 127
      %v557 = vpop.permute.xlu0 %556
      %558 = vrot.lane.b32.xlu0 %v532, 127
      %v559 = vpop.permute.xlu0 %558
      %560 = vrot.lane.b32.xlu0 %v533, 127
      %v561 = vpop.permute.xlu0 %560
      %562 = vrot.lane.b32.xlu0 %v534, 127
      %v563 = vpop.permute.xlu0 %562
      %564 = vrot.lane.b32.xlu0 %v535, 127
      %v565 = vpop.permute.xlu0 %564
      %566 = vrot.lane.b32.xlu0 %v536, 127
      %v567 = vpop.permute.xlu0 %566
      %568 = vrot.lane.b32.xlu0 %v537, 127
      %v569 = vpop.permute.xlu0 %568
      %570 = vrot.lane.b32.xlu0 %v538, 127
      %v571 = vpop.permute.xlu0 %570
      %572 = vrot.lane.b32.xlu0 %v539, 127
      %v573 = vpop.permute.xlu0 %572
      %574 = vrot.lane.b32.xlu0 %v540, 127
      %v575 = vpop.permute.xlu0 %574
      %576 = vrot.lane.b32.xlu0 %v541, 127
      %v577 = vpop.permute.xlu0 %576
      %vm578 = vcmask 1039360
      %v579 = vsel %vm578, %v555, %v557
      %v580 = vsel %vm578, %v557, %v559
      %v581 = vsel %vm578, %v561, %v563
      %v582 = vsel %vm578, %v563, %v565
      %v583 = vsel %vm578, %v567, %v569
      %v584 = vsel %vm578, %v569, %v571
      %v585 = vsel %vm578, %v573, %v575
      %v586 = vsel %vm578, %v575, %v577
      %595 = vst [vmem:[#allocation3 + $0x40] sm:$0xff] %v579
      %596 = vst [vmem:[#allocation3 + $0x48] sm:$0xff] %v580
      %597 = vst [vmem:[#allocation3 + $0x50] sm:$0xff] %v581
      %598 = vst [vmem:[#allocation3 + $0x58] sm:$0xff] %v582
      %599 = vst [vmem:[#allocation3 + $0x60] sm:$0xff] %v583
      %600 = vst [vmem:[#allocation3 + $0x68] sm:$0xff] %v584
      %601 = vst [vmem:[#allocation3 + $0x70] sm:$0xff] %v585
      %602 = vst [vmem:[#allocation3 + $0x78] sm:$0xff] %v586
      %v603 = vld [vmem:[#allocation2] sm:$0xff]
      %v604 = vld [vmem:[#allocation2 + $0x8] sm:$0xff]
      %v605 = vld [vmem:[#allocation2 + $0x10] sm:$0xff]
      %v606 = vld [vmem:[#allocation2 + $0x18] sm:$0xff]
      %v607 = vld [vmem:[#allocation2 + $0x20] sm:$0xff]
      %v608 = vld [vmem:[#allocation2 + $0x28] sm:$0xff]
      %v609 = vld [vmem:[#allocation2 + $0x30] sm:$0xff]
      %v610 = vld [vmem:[#allocation2 + $0x38] sm:$0xff]
      %v611 = vld [vmem:[#allocation2 + $0x40] sm:$0xff]
      %v612 = vld [vmem:[#allocation2 + $0x48] sm:$0xff]
      %v613 = vld [vmem:[#allocation2 + $0x50] sm:$0xff]
      %v614 = vld [vmem:[#allocation2 + $0x58] sm:$0xff]
      %627 = vrot.lane.b32.xlu0 %v603, 126
      %v628 = vpop.permute.xlu0 %627
      %629 = vrot.lane.b32.xlu0 %v604, 126
      %v630 = vpop.permute.xlu0 %629
      %631 = vrot.lane.b32.xlu0 %v605, 126
      %v632 = vpop.permute.xlu0 %631
      %633 = vrot.lane.b32.xlu0 %v606, 126
      %v634 = vpop.permute.xlu0 %633
      %635 = vrot.lane.b32.xlu0 %v607, 126
      %v636 = vpop.permute.xlu0 %635
      %637 = vrot.lane.b32.xlu0 %v608, 126
      %v638 = vpop.permute.xlu0 %637
      %639 = vrot.lane.b32.xlu0 %v609, 126
      %v640 = vpop.permute.xlu0 %639
      %641 = vrot.lane.b32.xlu0 %v610, 126
      %v642 = vpop.permute.xlu0 %641
      %643 = vrot.lane.b32.xlu0 %v611, 126
      %v644 = vpop.permute.xlu0 %643
      %645 = vrot.lane.b32.xlu0 %v612, 126
      %v646 = vpop.permute.xlu0 %645
      %647 = vrot.lane.b32.xlu0 %v613, 126
      %v648 = vpop.permute.xlu0 %647
      %649 = vrot.lane.b32.xlu0 %v614, 126
      %v650 = vpop.permute.xlu0 %649
      %vm651 = vcmask 1031168
      %v652 = vsel %vm651, %v628, %v630
      %v653 = vsel %vm651, %v630, %v632
      %v654 = vsel %vm651, %v634, %v636
      %v655 = vsel %vm651, %v636, %v638
      %v656 = vsel %vm651, %v640, %v642
      %v657 = vsel %vm651, %v642, %v644
      %v658 = vsel %vm651, %v646, %v648
      %v659 = vsel %vm651, %v648, %v650
      %668 = vst [vmem:[#allocation3 + $0x80] sm:$0xff] %v652
      %669 = vst [vmem:[#allocation3 + $0x88] sm:$0xff] %v653
      %670 = vst [vmem:[#allocation3 + $0x90] sm:$0xff] %v654
      %671 = vst [vmem:[#allocation3 + $0x98] sm:$0xff] %v655
      %672 = vst [vmem:[#allocation3 + $0xa0] sm:$0xff] %v656
      %673 = vst [vmem:[#allocation3 + $0xa8] sm:$0xff] %v657
      %674 = vst [vmem:[#allocation3 + $0xb0] sm:$0xff] %v658
      %675 = vst [vmem:[#allocation3 + $0xb8] sm:$0xff] %v659
      %v676 = vld [vmem:[#allocation2] sm:$0xff]
      %v677 = vld [vmem:[#allocation2 + $0x8] sm:$0xff]
      %v678 = vld [vmem:[#allocation2 + $0x10] sm:$0xff]
      %v679 = vld [vmem:[#allocation2 + $0x18] sm:$0xff]
      %v680 = vld [vmem:[#allocation2 + $0x20] sm:$0xff]
      %v681 = vld [vmem:[#allocation2 + $0x28] sm:$0xff]
      %v682 = vld [vmem:[#allocation2 + $0x30] sm:$0xff]
      %v683 = vld [vmem:[#allocation2 + $0x38] sm:$0xff]
      %v684 = vld [vmem:[#allocation2 + $0x40] sm:$0xff]
      %v685 = vld [vmem:[#allocation2 + $0x48] sm:$0xff]
      %v686 = vld [vmem:[#allocation2 + $0x50] sm:$0xff]
      %v687 = vld [vmem:[#allocation2 + $0x58] sm:$0xff]
      %700 = vrot.lane.b32.xlu0 %v676, 112
      %v701 = vpop.permute.xlu0 %700
      %702 = vrot.lane.b32.xlu0 %v677, 112
      %v703 = vpop.permute.xlu0 %702
      %704 = vrot.lane.b32.xlu0 %v678, 112
      %v705 = vpop.permute.xlu0 %704
      %706 = vrot.lane.b32.xlu0 %v679, 112
      %v707 = vpop.permute.xlu0 %706
      %708 = vrot.lane.b32.xlu0 %v680, 112
      %v709 = vpop.permute.xlu0 %708
      %710 = vrot.lane.b32.xlu0 %v681, 112
      %v711 = vpop.permute.xlu0 %710
      %712 = vrot.lane.b32.xlu0 %v682, 112
      %v713 = vpop.permute.xlu0 %712
      %714 = vrot.lane.b32.xlu0 %v683, 112
      %v715 = vpop.permute.xlu0 %714
      %716 = vrot.lane.b32.xlu0 %v684, 112
      %v717 = vpop.permute.xlu0 %716
      %718 = vrot.lane.b32.xlu0 %v685, 112
      %v719 = vpop.permute.xlu0 %718
      %720 = vrot.lane.b32.xlu0 %v686, 112
      %v721 = vpop.permute.xlu0 %720
      %722 = vrot.lane.b32.xlu0 %v687, 112
      %v723 = vpop.permute.xlu0 %722
      %vm724 = vcmask 916480
      %v725 = vsel %vm724, %v701, %v703
      %v726 = vsel %vm724, %v703, %v705
      %v727 = vsel %vm724, %v707, %v709
      %v728 = vsel %vm724, %v709, %v711
      %v729 = vsel %vm724, %v713, %v715
      %v730 = vsel %vm724, %v715, %v717
      %v731 = vsel %vm724, %v719, %v721
      %v732 = vsel %vm724, %v721, %v723
      %741 = vst [vmem:[#allocation3 + $0xc0] sm:$0xff] %v725
      %742 = vst [vmem:[#allocation3 + $0xc8] sm:$0xff] %v726
      %743 = vst [vmem:[#allocation3 + $0xd0] sm:$0xff] %v727
      %744 = vst [vmem:[#allocation3 + $0xd8] sm:$0xff] %v728
      %745 = vst [vmem:[#allocation3 + $0xe0] sm:$0xff] %v729
      %746 = vst [vmem:[#allocation3 + $0xe8] sm:$0xff] %v730
      %747 = vst [vmem:[#allocation3 + $0xf0] sm:$0xff] %v731
      %748 = vst [vmem:[#allocation3 + $0xf8] sm:$0xff] %v732
      %v749 = vld [vmem:[#allocation2] sm:$0xff]
      %v750 = vld [vmem:[#allocation2 + $0x8] sm:$0xff]
      %v751 = vld [vmem:[#allocation2 + $0x10] sm:$0xff]
      %v752 = vld [vmem:[#allocation2 + $0x18] sm:$0xff]
      %v753 = vld [vmem:[#allocation2 + $0x20] sm:$0xff]
      %v754 = vld [vmem:[#allocation2 + $0x28] sm:$0xff]
      %v755 = vld [vmem:[#allocation2 + $0x30] sm:$0xff]
      %v756 = vld [vmem:[#allocation2 + $0x38] sm:$0xff]
      %v757 = vld [vmem:[#allocation2 + $0x40] sm:$0xff]
      %v758 = vld [vmem:[#allocation2 + $0x48] sm:$0xff]
      %v759 = vld [vmem:[#allocation2 + $0x50] sm:$0xff]
      %v760 = vld [vmem:[#allocation2 + $0x58] sm:$0xff]
      %773 = vrot.lane.b32.xlu0 %v749, 111
      %v774 = vpop.permute.xlu0 %773
      %775 = vrot.lane.b32.xlu0 %v750, 111
      %v776 = vpop.permute.xlu0 %775
      %777 = vrot.lane.b32.xlu0 %v751, 111
      %v778 = vpop.permute.xlu0 %777
      %779 = vrot.lane.b32.xlu0 %v752, 111
      %v780 = vpop.permute.xlu0 %779
      %781 = vrot.lane.b32.xlu0 %v753, 111
      %v782 = vpop.permute.xlu0 %781
      %783 = vrot.lane.b32.xlu0 %v754, 111
      %v784 = vpop.permute.xlu0 %783
      %785 = vrot.lane.b32.xlu0 %v755, 111
      %v786 = vpop.permute.xlu0 %785
      %787 = vrot.lane.b32.xlu0 %v756, 111
      %v788 = vpop.permute.xlu0 %787
      %789 = vrot.lane.b32.xlu0 %v757, 111
      %v790 = vpop.permute.xlu0 %789
      %791 = vrot.lane.b32.xlu0 %v758, 111
      %v792 = vpop.permute.xlu0 %791
      %793 = vrot.lane.b32.xlu0 %v759, 111
      %v794 = vpop.permute.xlu0 %793
      %795 = vrot.lane.b32.xlu0 %v760, 111
      %v796 = vpop.permute.xlu0 %795
      %vm797 = vcmask 908288
      %v798 = vsel %vm797, %v774, %v776
      %v799 = vsel %vm797, %v776, %v778
      %v800 = vsel %vm797, %v780, %v782
      %v801 = vsel %vm797, %v782, %v784
      %v802 = vsel %vm797, %v786, %v788
      %v803 = vsel %vm797, %v788, %v790
      %v804 = vsel %vm797, %v792, %v794
      %v805 = vsel %vm797, %v794, %v796
      %814 = vst [vmem:[#allocation3 + $0x100] sm:$0xff] %v798
      %815 = vst [vmem:[#allocation3 + $0x108] sm:$0xff] %v799
      %816 = vst [vmem:[#allocation3 + $0x110] sm:$0xff] %v800
      %817 = vst [vmem:[#allocation3 + $0x118] sm:$0xff] %v801
      %818 = vst [vmem:[#allocation3 + $0x120] sm:$0xff] %v802
      %819 = vst [vmem:[#allocation3 + $0x128] sm:$0xff] %v803
      %820 = vst [vmem:[#allocation3 + $0x130] sm:$0xff] %v804
      %821 = vst [vmem:[#allocation3 + $0x138] sm:$0xff] %v805
      %v822 = vld [vmem:[#allocation2] sm:$0xff]
      %v823 = vld [vmem:[#allocation2 + $0x8] sm:$0xff]
      %v824 = vld [vmem:[#allocation2 + $0x10] sm:$0xff]
      %v825 = vld [vmem:[#allocation2 + $0x18] sm:$0xff]
      %v826 = vld [vmem:[#allocation2 + $0x20] sm:$0xff]
      %v827 = vld [vmem:[#allocation2 + $0x28] sm:$0xff]
      %v828 = vld [vmem:[#allocation2 + $0x30] sm:$0xff]
      %v829 = vld [vmem:[#allocation2 + $0x38] sm:$0xff]
      %v830 = vld [vmem:[#allocation2 + $0x40] sm:$0xff]
      %v831 = vld [vmem:[#allocation2 + $0x48] sm:$0xff]
      %v832 = vld [vmem:[#allocation2 + $0x50] sm:$0xff]
      %v833 = vld [vmem:[#allocation2 + $0x58] sm:$0xff]
      %846 = vrot.lane.b32.xlu0 %v822, 110
      %v847 = vpop.permute.xlu0 %846
      %848 = vrot.lane.b32.xlu0 %v823, 110
      %v849 = vpop.permute.xlu0 %848
      %850 = vrot.lane.b32.xlu0 %v824, 110
      %v851 = vpop.permute.xlu0 %850
      %852 = vrot.lane.b32.xlu0 %v825, 110
      %v853 = vpop.permute.xlu0 %852
      %854 = vrot.lane.b32.xlu0 %v826, 110
      %v855 = vpop.permute.xlu0 %854
      %856 = vrot.lane.b32.xlu0 %v827, 110
      %v857 = vpop.permute.xlu0 %856
      %858 = vrot.lane.b32.xlu0 %v828, 110
      %v859 = vpop.permute.xlu0 %858
      %860 = vrot.lane.b32.xlu0 %v829, 110
      %v861 = vpop.permute.xlu0 %860
      %862 = vrot.lane.b32.xlu0 %v830, 110
      %v863 = vpop.permute.xlu0 %862
      %864 = vrot.lane.b32.xlu0 %v831, 110
      %v865 = vpop.permute.xlu0 %864
      %866 = vrot.lane.b32.xlu0 %v832, 110
      %v867 = vpop.permute.xlu0 %866
      %868 = vrot.lane.b32.xlu0 %v833, 110
      %v869 = vpop.permute.xlu0 %868
      %vm870 = vcmask 900096
      %v871 = vsel %vm870, %v847, %v849
      %v872 = vsel %vm870, %v849, %v851
      %v873 = vsel %vm870, %v853, %v855
      %v874 = vsel %vm870, %v855, %v857
      %v875 = vsel %vm870, %v859, %v861
      %v876 = vsel %vm870, %v861, %v863
      %v877 = vsel %vm870, %v865, %v867
      %v878 = vsel %vm870, %v867, %v869
      %887 = vst [vmem:[#allocation3 + $0x140] sm:$0xff] %v871
      %888 = vst [vmem:[#allocation3 + $0x148] sm:$0xff] %v872
      %889 = vst [vmem:[#allocation3 + $0x150] sm:$0xff] %v873
      %890 = vst [vmem:[#allocation3 + $0x158] sm:$0xff] %v874
      %891 = vst [vmem:[#allocation3 + $0x160] sm:$0xff] %v875
      %892 = vst [vmem:[#allocation3 + $0x168] sm:$0xff] %v876
      %893 = vst [vmem:[#allocation3 + $0x170] sm:$0xff] %v877
      %894 = vst [vmem:[#allocation3 + $0x178] sm:$0xff] %v878
      %v895 = vld [vmem:[#allocation2] sm:$0xff]
      %v896 = vld [vmem:[#allocation2 + $0x8] sm:$0xff]
      %v897 = vld [vmem:[#allocation2 + $0x10] sm:$0xff]
      %v898 = vld [vmem:[#allocation2 + $0x18] sm:$0xff]
      %v899 = vld [vmem:[#allocation2 + $0x20] sm:$0xff]
      %v900 = vld [vmem:[#allocation2 + $0x28] sm:$0xff]
      %v901 = vld [vmem:[#allocation2 + $0x30] sm:$0xff]
      %v902 = vld [vmem:[#allocation2 + $0x38] sm:$0xff]
      %v903 = vld [vmem:[#allocation2 + $0x40] sm:$0xff]
      %v904 = vld [vmem:[#allocation2 + $0x48] sm:$0xff]
      %v905 = vld [vmem:[#allocation2 + $0x50] sm:$0xff]
      %v906 = vld [vmem:[#allocation2 + $0x58] sm:$0xff]
      %919 = vrot.lane.b32.xlu0 %v895, 96
      %v920 = vpop.permute.xlu0 %919
      %921 = vrot.lane.b32.xlu0 %v896, 96
      %v922 = vpop.permute.xlu0 %921
      %923 = vrot.lane.b32.xlu0 %v897, 96
      %v924 = vpop.permute.xlu0 %923
      %925 = vrot.lane.b32.xlu0 %v898, 96
      %v926 = vpop.permute.xlu0 %925
      %927 = vrot.lane.b32.xlu0 %v899, 96
      %v928 = vpop.permute.xlu0 %927
      %929 = vrot.lane.b32.xlu0 %v900, 96
      %v930 = vpop.permute.xlu0 %929
      %931 = vrot.lane.b32.xlu0 %v901, 96
      %v932 = vpop.permute.xlu0 %931
      %933 = vrot.lane.b32.xlu0 %v902, 96
      %v934 = vpop.permute.xlu0 %933
      %935 = vrot.lane.b32.xlu0 %v903, 96
      %v936 = vpop.permute.xlu0 %935
      %937 = vrot.lane.b32.xlu0 %v904, 96
      %v938 = vpop.permute.xlu0 %937
      %939 = vrot.lane.b32.xlu0 %v905, 96
      %v940 = vpop.permute.xlu0 %939
      %941 = vrot.lane.b32.xlu0 %v906, 96
      %v942 = vpop.permute.xlu0 %941
      %vm943 = vcmask 785408
      %v944 = vsel %vm943, %v920, %v922
      %v945 = vsel %vm943, %v922, %v924
      %v946 = vsel %vm943, %v926, %v928
      %v947 = vsel %vm943, %v928, %v930
      %v948 = vsel %vm943, %v932, %v934
      %v949 = vsel %vm943, %v934, %v936
      %v950 = vsel %vm943, %v938, %v940
      %v951 = vsel %vm943, %v940, %v942
      %960 = vst [vmem:[#allocation3 + $0x180] sm:$0xff] %v944
      %961 = vst [vmem:[#allocation3 + $0x188] sm:$0xff] %v945
      %962 = vst [vmem:[#allocation3 + $0x190] sm:$0xff] %v946
      %963 = vst [vmem:[#allocation3 + $0x198] sm:$0xff] %v947
      %964 = vst [vmem:[#allocation3 + $0x1a0] sm:$0xff] %v948
      %965 = vst [vmem:[#allocation3 + $0x1a8] sm:$0xff] %v949
      %966 = vst [vmem:[#allocation3 + $0x1b0] sm:$0xff] %v950
      %967 = vst [vmem:[#allocation3 + $0x1b8] sm:$0xff] %v951
      %v968 = vld [vmem:[#allocation2] sm:$0xff]
      %v969 = vld [vmem:[#allocation2 + $0x8] sm:$0xff]
      %v970 = vld [vmem:[#allocation2 + $0x10] sm:$0xff]
      %v971 = vld [vmem:[#allocation2 + $0x18] sm:$0xff]
      %v972 = vld [vmem:[#allocation2 + $0x20] sm:$0xff]
      %v973 = vld [vmem:[#allocation2 + $0x28] sm:$0xff]
      %v974 = vld [vmem:[#allocation2 + $0x30] sm:$0xff]
      %v975 = vld [vmem:[#allocation2 + $0x38] sm:$0xff]
      %v976 = vld [vmem:[#allocation2 + $0x40] sm:$0xff]
      %v977 = vld [vmem:[#allocation2 + $0x48] sm:$0xff]
      %v978 = vld [vmem:[#allocation2 + $0x50] sm:$0xff]
      %v979 = vld [vmem:[#allocation2 + $0x58] sm:$0xff]
      %992 = vrot.lane.b32.xlu0 %v968, 95
      %v993 = vpop.permute.xlu0 %992
      %994 = vrot.lane.b32.xlu0 %v969, 95
      %v995 = vpop.permute.xlu0 %994
      %996 = vrot.lane.b32.xlu0 %v970, 95
      %v997 = vpop.permute.xlu0 %996
      %998 = vrot.lane.b32.xlu0 %v971, 95
      %v999 = vpop.permute.xlu0 %998
      %1000 = vrot.lane.b32.xlu0 %v972, 95
      %v1001 = vpop.permute.xlu0 %1000
      %1002 = vrot.lane.b32.xlu0 %v973, 95
      %v1003 = vpop.permute.xlu0 %1002
      %1004 = vrot.lane.b32.xlu0 %v974, 95
      %v1005 = vpop.permute.xlu0 %1004
      %1006 = vrot.lane.b32.xlu0 %v975, 95
      %v1007 = vpop.permute.xlu0 %1006
      %1008 = vrot.lane.b32.xlu0 %v976, 95
      %v1009 = vpop.permute.xlu0 %1008
      %1010 = vrot.lane.b32.xlu0 %v977, 95
      %v1011 = vpop.permute.xlu0 %1010
      %1012 = vrot.lane.b32.xlu0 %v978, 95
      %v1013 = vpop.permute.xlu0 %1012
      %1014 = vrot.lane.b32.xlu0 %v979, 95
      %v1015 = vpop.permute.xlu0 %1014
      %vm1016 = vcmask 777216
      %v1017 = vsel %vm1016, %v993, %v995
      %v1018 = vsel %vm1016, %v995, %v997
      %v1019 = vsel %vm1016, %v999, %v1001
      %v1020 = vsel %vm1016, %v1001, %v1003
      %v1021 = vsel %vm1016, %v1005, %v1007
      %v1022 = vsel %vm1016, %v1007, %v1009
      %v1023 = vsel %vm1016, %v1011, %v1013
      %v1024 = vsel %vm1016, %v1013, %v1015
      %1033 = vst [vmem:[#allocation3 + $0x1c0] sm:$0xff] %v1017
      %1034 = vst [vmem:[#allocation3 + $0x1c8] sm:$0xff] %v1018
      %1035 = vst [vmem:[#allocation3 + $0x1d0] sm:$0xff] %v1019
      %1036 = vst [vmem:[#allocation3 + $0x1d8] sm:$0xff] %v1020
      %1037 = vst [vmem:[#allocation3 + $0x1e0] sm:$0xff] %v1021
      %1038 = vst [vmem:[#allocation3 + $0x1e8] sm:$0xff] %v1022
      %1039 = vst [vmem:[#allocation3 + $0x1f0] sm:$0xff] %v1023
      %1040 = vst [vmem:[#allocation3 + $0x1f8] sm:$0xff] %v1024
      %v1041 = vld [vmem:[#allocation2] sm:$0xff]
      %v1042 = vld [vmem:[#allocation2 + $0x8] sm:$0xff]
      %v1043 = vld [vmem:[#allocation2 + $0x10] sm:$0xff]
      %v1044 = vld [vmem:[#allocation2 + $0x18] sm:$0xff]
      %v1045 = vld [vmem:[#allocation2 + $0x20] sm:$0xff]
      %v1046 = vld [vmem:[#allocation2 + $0x28] sm:$0xff]
      %v1047 = vld [vmem:[#allocation2 + $0x30] sm:$0xff]
      %v1048 = vld [vmem:[#allocation2 + $0x38] sm:$0xff]
      %v1049 = vld [vmem:[#allocation2 + $0x40] sm:$0xff]
      %v1050 = vld [vmem:[#allocation2 + $0x48] sm:$0xff]
      %v1051 = vld [vmem:[#allocation2 + $0x50] sm:$0xff]
      %v1052 = vld [vmem:[#allocation2 + $0x58] sm:$0xff]
      %1065 = vrot.lane.b32.xlu0 %v1041, 94
      %v1066 = vpop.permute.xlu0 %1065
      %1067 = vrot.lane.b32.xlu0 %v1042, 94
      %v1068 = vpop.permute.xlu0 %1067
      %1069 = vrot.lane.b32.xlu0 %v1043, 94
      %v1070 = vpop.permute.xlu0 %1069
      %1071 = vrot.lane.b32.xlu0 %v1044, 94
      %v1072 = vpop.permute.xlu0 %1071
      %1073 = vrot.lane.b32.xlu0 %v1045, 94
      %v1074 = vpop.permute.xlu0 %1073
      %1075 = vrot.lane.b32.xlu0 %v1046, 94
      %v1076 = vpop.permute.xlu0 %1075
      %1077 = vrot.lane.b32.xlu0 %v1047, 94
      %v1078 = vpop.permute.xlu0 %1077
      %1079 = vrot.lane.b32.xlu0 %v1048, 94
      %v1080 = vpop.permute.xlu0 %1079
      %1081 = vrot.lane.b32.xlu0 %v1049, 94
      %v1082 = vpop.permute.xlu0 %1081
      %1083 = vrot.lane.b32.xlu0 %v1050, 94
      %v1084 = vpop.permute.xlu0 %1083
      %1085 = vrot.lane.b32.xlu0 %v1051, 94
      %v1086 = vpop.permute.xlu0 %1085
      %1087 = vrot.lane.b32.xlu0 %v1052, 94
      %v1088 = vpop.permute.xlu0 %1087
      %vm1089 = vcmask 769024
      %v1090 = vsel %vm1089, %v1066, %v1068
      %v1091 = vsel %vm1089, %v1068, %v1070
      %v1092 = vsel %vm1089, %v1072, %v1074
      %v1093 = vsel %vm1089, %v1074, %v1076
      %v1094 = vsel %vm1089, %v1078, %v1080
      %v1095 = vsel %vm1089, %v1080, %v1082
      %v1096 = vsel %vm1089, %v1084, %v1086
      %v1097 = vsel %vm1089, %v1086, %v1088
      %1106 = vst [vmem:[#allocation3 + $0x200] sm:$0xff] %v1090
      %1107 = vst [vmem:[#allocation3 + $0x208] sm:$0xff] %v1091
      %1108 = vst [vmem:[#allocation3 + $0x210] sm:$0xff] %v1092
      %1109 = vst [vmem:[#allocation3 + $0x218] sm:$0xff] %v1093
      %1110 = vst [vmem:[#allocation3 + $0x220] sm:$0xff] %v1094
      %1111 = vst [vmem:[#allocation3 + $0x228] sm:$0xff] %v1095
      %1112 = vst [vmem:[#allocation3 + $0x230] sm:$0xff] %v1096
      %1113 = vst [vmem:[#allocation3 + $0x238] sm:$0xff] %v1097
      %v1114 = vld [vmem:[%s3] sm:$0xff]
      %v1115 = vld [vmem:[%s3 + $0x8] sm:$0xff]
      %v1116 = vld [vmem:[%s3 + $0x10] sm:$0xff]
      %v1117 = vld [vmem:[%s3 + $0x18] sm:$0xff]
      %v1118 = vld [vmem:[%s3 + $0x20] sm:$0xff]
      %v1119 = vld [vmem:[%s3 + $0x28] sm:$0xff]
      %v1120 = vld [vmem:[%s3 + $0x30] sm:$0xff]
      %v1121 = vld [vmem:[%s3 + $0x38] sm:$0xff]
      %v1122 = vld [vmem:[%s3 + $0x40] sm:$0xff]
      %v1123 = vld [vmem:[%s3 + $0x48] sm:$0xff]
      %v1124 = vld [vmem:[%s3 + $0x50] sm:$0xff]
      %v1125 = vld [vmem:[%s3 + $0x58] sm:$0xff]
      %v1126 = vld [vmem:[#allocation3] sm:$0xff]
      %v1127 = vld [vmem:[#allocation3 + $0x8] sm:$0xff]
      %v1128 = vld [vmem:[#allocation3 + $0x10] sm:$0xff]
      %v1129 = vld [vmem:[#allocation3 + $0x18] sm:$0xff]
      %v1130 = vld [vmem:[#allocation3 + $0x20] sm:$0xff]
      %v1131 = vld [vmem:[#allocation3 + $0x28] sm:$0xff]
      %v1132 = vld [vmem:[#allocation3 + $0x30] sm:$0xff]
      %v1133 = vld [vmem:[#allocation3 + $0x38] sm:$0xff]
      %v1134 = vld [vmem:[#allocation3 + $0x40] sm:$0xff]
      %v1135 = vld [vmem:[#allocation3 + $0x48] sm:$0xff]
      %v1136 = vld [vmem:[#allocation3 + $0x50] sm:$0xff]
      %v1137 = vld [vmem:[#allocation3 + $0x58] sm:$0xff]
      %v1138 = vld [vmem:[#allocation3 + $0x60] sm:$0xff]
      %v1139 = vld [vmem:[#allocation3 + $0x68] sm:$0xff]
      %v1140 = vld [vmem:[#allocation3 + $0x70] sm:$0xff]
      %v1141 = vld [vmem:[#allocation3 + $0x78] sm:$0xff]
      %v1142 = vld [vmem:[#allocation3 + $0x80] sm:$0xff]
      %v1143 = vld [vmem:[#allocation3 + $0x88] sm:$0xff]
      %v1144 = vld [vmem:[#allocation3 + $0x90] sm:$0xff]
      %v1145 = vld [vmem:[#allocation3 + $0x98] sm:$0xff]
      %v1146 = vld [vmem:[#allocation3 + $0xa0] sm:$0xff]
      %v1147 = vld [vmem:[#allocation3 + $0xa8] sm:$0xff]
      %v1148 = vld [vmem:[#allocation3 + $0xb0] sm:$0xff]
      %v1149 = vld [vmem:[#allocation3 + $0xb8] sm:$0xff]
      %v1150 = vld [vmem:[#allocation3 + $0xc0] sm:$0xff]
      %v1151 = vld [vmem:[#allocation3 + $0xc8] sm:$0xff]
      %v1152 = vld [vmem:[#allocation3 + $0xd0] sm:$0xff]
      %v1153 = vld [vmem:[#allocation3 + $0xd8] sm:$0xff]
      %v1154 = vld [vmem:[#allocation3 + $0xe0] sm:$0xff]
      %v1155 = vld [vmem:[#allocation3 + $0xe8] sm:$0xff]
      %v1156 = vld [vmem:[#allocation3 + $0xf0] sm:$0xff]
      %v1157 = vld [vmem:[#allocation3 + $0xf8] sm:$0xff]
      %v1158 = vld [vmem:[#allocation3 + $0x100] sm:$0xff]
      %v1159 = vld [vmem:[#allocation3 + $0x108] sm:$0xff]
      %v1160 = vld [vmem:[#allocation3 + $0x110] sm:$0xff]
      %v1161 = vld [vmem:[#allocation3 + $0x118] sm:$0xff]
      %v1162 = vld [vmem:[#allocation3 + $0x120] sm:$0xff]
      %v1163 = vld [vmem:[#allocation3 + $0x128] sm:$0xff]
      %v1164 = vld [vmem:[#allocation3 + $0x130] sm:$0xff]
      %v1165 = vld [vmem:[#allocation3 + $0x138] sm:$0xff]
      %v1166 = vld [vmem:[#allocation3 + $0x140] sm:$0xff]
      %v1167 = vld [vmem:[#allocation3 + $0x148] sm:$0xff]
      %v1168 = vld [vmem:[#allocation3 + $0x150] sm:$0xff]
      %v1169 = vld [vmem:[#allocation3 + $0x158] sm:$0xff]
      %v1170 = vld [vmem:[#allocation3 + $0x160] sm:$0xff]
      %v1171 = vld [vmem:[#allocation3 + $0x168] sm:$0xff]
      %v1172 = vld [vmem:[#allocation3 + $0x170] sm:$0xff]
      %v1173 = vld [vmem:[#allocation3 + $0x178] sm:$0xff]
      %v1174 = vld [vmem:[#allocation3 + $0x180] sm:$0xff]
      %v1175 = vld [vmem:[#allocation3 + $0x188] sm:$0xff]
      %v1176 = vld [vmem:[#allocation3 + $0x190] sm:$0xff]
      %v1177 = vld [vmem:[#allocation3 + $0x198] sm:$0xff]
      %v1178 = vld [vmem:[#allocation3 + $0x1a0] sm:$0xff]
      %v1179 = vld [vmem:[#allocation3 + $0x1a8] sm:$0xff]
      %v1180 = vld [vmem:[#allocation3 + $0x1b0] sm:$0xff]
      %v1181 = vld [vmem:[#allocation3 + $0x1b8] sm:$0xff]
      %v1182 = vld [vmem:[#allocation3 + $0x1c0] sm:$0xff]
      %v1183 = vld [vmem:[#allocation3 + $0x1c8] sm:$0xff]
      %v1184 = vld [vmem:[#allocation3 + $0x1d0] sm:$0xff]
      %v1185 = vld [vmem:[#allocation3 + $0x1d8] sm:$0xff]
      %v1186 = vld [vmem:[#allocation3 + $0x1e0] sm:$0xff]
      %v1187 = vld [vmem:[#allocation3 + $0x1e8] sm:$0xff]
      %v1188 = vld [vmem:[#allocation3 + $0x1f0] sm:$0xff]
      %v1189 = vld [vmem:[#allocation3 + $0x1f8] sm:$0xff]
      %v1190 = vld [vmem:[#allocation3 + $0x200] sm:$0xff]
      %v1191 = vld [vmem:[#allocation3 + $0x208] sm:$0xff]
      %v1192 = vld [vmem:[#allocation3 + $0x210] sm:$0xff]
      %v1193 = vld [vmem:[#allocation3 + $0x218] sm:$0xff]
      %v1194 = vld [vmem:[#allocation3 + $0x220] sm:$0xff]
      %v1195 = vld [vmem:[#allocation3 + $0x228] sm:$0xff]
      %v1196 = vld [vmem:[#allocation3 + $0x230] sm:$0xff]
      %v1197 = vld [vmem:[#allocation3 + $0x238] sm:$0xff]
      %v1198 = vld [vmem:[%s4] sm:$0xff]
      %v1199 = vld [vmem:[%s4 + $0x8] sm:$0xff]
      %v1200 = vld [vmem:[%s4 + $0x10] sm:$0xff]
      %v1201 = vld [vmem:[%s4 + $0x18] sm:$0xff]
      %1203 = vset.pattern.permute.xlu0 0
      %1204 = vperm.xlu0 %1203, %v1198
      %v1205 = vpop.permute.xlu0 %1204
      %1208 = vset.pattern.permute.xlu0 0
      %1209 = vperm.xlu0 %1208, %v1199
      %v1210 = vpop.permute.xlu0 %1209
      %1213 = vset.pattern.permute.xlu0 0
      %1214 = vperm.xlu0 %1213, %v1200
      %v1215 = vpop.permute.xlu0 %1214
      %1218 = vset.pattern.permute.xlu0 0
      %1219 = vperm.xlu0 %1218, %v1201
      %v1220 = vpop.permute.xlu0 %1219
      %vm1222 = vcmask 261120
      %v1224 = vsel %vm1222, %v1116, 0
      %v1227 = vsel %vm1222, %v1119, 0
      %v1230 = vsel %vm1222, %v1122, 0
      %v1233 = vsel %vm1222, %v1125, 0
      %1235 = vmatprep.subr.mxu0 %v1127
      %1236 = vmatpush1.msra.mxu0 %v1126
      %1237 = vmatprep.subr.mxu0 %v1129
      %1238 = vmatpush1.msra.mxu0 %v1128
      %1239 = vmatprep.subr.mxu0 %v1131
      %1240 = vmatpush1.msra.mxu0 %v1130
      %1241 = vmatprep.subr.mxu0 %v1133
      %1242 = vmatpush1.msra.mxu0 %v1132
      %1243 = vmatprep.subr.mxu0 %v1135
      %1244 = vmatpush1.msra.mxu0 %v1134
      %1245 = vmatprep.subr.mxu0 %v1137
      %1246 = vmatpush1.msra.mxu0 %v1136
      %1247 = vmatprep.subr.mxu0 %v1139
      %1248 = vmatpush1.msra.mxu0 %v1138
      %1249 = vmatprep.subr.mxu0 %v1141
      %1250 = vmatpush1.msra.mxu0 %v1140
      %1251 = vmatprep.subr.mxu0 %v1143
      %1252 = vmatpush1.msra.mxu0 %v1142
      %1253 = vmatprep.subr.mxu0 %v1145
      %1254 = vmatpush1.msra.mxu0 %v1144
      %1255 = vmatprep.subr.mxu0 %v1147
      %1256 = vmatpush1.msra.mxu0 %v1146
      %1257 = vmatprep.subr.mxu0 %v1149
      %1258 = vmatpush1.msra.mxu0 %v1148
      %1259 = vmatprep.subr.mxu0 %v1151
      %1260 = vmatpush1.msra.mxu0 %v1150
      %1261 = vmatprep.subr.mxu0 %v1153
      %1262 = vmatpush1.msra.mxu0 %v1152
      %1263 = vmatprep.subr.mxu0 %v1155
      %1264 = vmatpush1.msra.mxu0 %v1154
      %1265 = vmatprep.subr.mxu0 %v1157
      %1266 = vmatpush1.msra.mxu0 %v1156
      %1267 = vmatprep.subr.mxu0 %v1159
      %1268 = vmatpush1.msra.mxu0 %v1158
      %1269 = vmatprep.subr.mxu0 %v1161
      %1270 = vmatpush1.msra.mxu0 %v1160
      %1271 = vmatprep.subr.mxu0 %v1163
      %1272 = vmatpush1.msra.mxu0 %v1162
      %1273 = vmatprep.subr.mxu0 %v1165
      %1274 = vmatpush1.msra.mxu0 %v1164
      %1275 = vmatprep.subr.mxu0 %v1167
      %1276 = vmatpush1.msra.mxu0 %v1166
      %1277 = vmatprep.subr.mxu0 %v1169
      %1278 = vmatpush1.msra.mxu0 %v1168
      %1279 = vmatprep.subr.mxu0 %v1171
      %1280 = vmatpush1.msra.mxu0 %v1170
      %1281 = vmatprep.subr.mxu0 %v1173
      %1282 = vmatpush1.msra.mxu0 %v1172
      %1283 = vmatprep.subr.mxu0 %v1175
      %1284 = vmatpush1.msra.mxu0 %v1174
      %1285 = vmatprep.subr.mxu0 %v1177
      %1286 = vmatpush1.msra.mxu0 %v1176
      %1287 = vmatprep.subr.mxu0 %v1179
      %1288 = vmatpush1.msra.mxu0 %v1178
      %1289 = vmatprep.subr.mxu0 %v1181
      %1290 = vmatpush1.msra.mxu0 %v1180
      %1291 = vmatprep.subr.mxu0 %v1183
      %1292 = vmatpush1.msra.mxu0 %v1182
      %1293 = vmatprep.subr.mxu0 %v1185
      %1294 = vmatpush1.msra.mxu0 %v1184
      %1295 = vmatprep.subr.mxu0 %v1187
      %1296 = vmatpush1.msra.mxu0 %v1186
      %1297 = vmatprep.subr.mxu0 %v1189
      %1298 = vmatpush1.msra.mxu0 %v1188
      %1299 = vmatprep.mubr.f32.mxu0 %v1115
      %1300 = vmatmul.mubr.f32.gmra.mrb[0].mxu0 %v1114
      %v1301 = vpop.f32.mrb[0].mxu0
      %v1302 = vadd.f32 %v1205, %v1301
      %v1303 = vpop.f32.mrb[0].mxu0
      %v1304 = vadd.f32 %v1205, %v1303
      %1305 = vmatprep.mubr.f32.mxu0 %v1118
      %1306 = vmatmul.mubr.f32.gmra.mrb[0].mxu0 %v1117
      %v1307 = vpop.f32.mrb[0].mxu0
      %v1308 = vadd.f32 %v1210, %v1307
      %v1309 = vpop.f32.mrb[0].mxu0
      %v1310 = vadd.f32 %v1210, %v1309
      %1311 = vmatprep.mubr.f32.mxu0 %v1121
      %1312 = vmatmul.mubr.f32.gmra.mrb[0].mxu0 %v1120
      %v1313 = vpop.f32.mrb[0].mxu0
      %v1314 = vadd.f32 %v1215, %v1313
      %v1315 = vpop.f32.mrb[0].mxu0
      %v1316 = vadd.f32 %v1215, %v1315
      %1317 = vmatprep.mubr.f32.mxu0 %v1124
      %1318 = vmatmul.mubr.f32.gmra.mrb[0].mxu0 %v1123
      %v1319 = vpop.f32.mrb[0].mxu0
      %v1320 = vadd.f32 %v1220, %v1319
      %v1321 = vpop.f32.mrb[0].mxu0
      %v1322 = vadd.f32 %v1220, %v1321
      %1323 = vdwg.mxu0
      %1324 = vmatprep.subr.mxu0 %v1191
      %1325 = vmatpush1.msra.mxu0 %v1190
      %1326 = vmatprep.subr.mxu0 %v1193
      %1327 = vmatpush1.msra.mxu0 %v1192
      %1328 = vmatprep.subr.mxu0 %v1195
      %1329 = vmatpush1.msra.mxu0 %v1194
      %1330 = vmatprep.subr.mxu0 %v1197
      %1331 = vmatpush1.msra.mxu0 %v1196
      %1332 = vmatprep.subr.mxu0 0.0
      %1333 = vmatpush1.msra.mxu0 0.0
      %1334 = vmatprep.subr.mxu0 0.0
      %1335 = vmatpush1.msra.mxu0 0.0
      %1336 = vmatprep.subr.mxu0 0.0
      %1337 = vmatpush1.msra.mxu0 0.0
      %1338 = vmatprep.subr.mxu0 0.0
      %1339 = vmatpush1.msra.mxu0 0.0
      %1340 = vmatprep.subr.mxu0 0.0
      %1341 = vmatpush1.msra.mxu0 0.0
      %1342 = vmatprep.subr.mxu0 0.0
      %1343 = vmatpush1.msra.mxu0 0.0
      %1344 = vmatprep.subr.mxu0 0.0
      %1345 = vmatpush1.msra.mxu0 0.0
      %1346 = vmatprep.subr.mxu0 0.0
      %1347 = vmatpush1.msra.mxu0 0.0
      %1348 = vmatprep.subr.mxu0 0.0
      %1349 = vmatpush1.msra.mxu0 0.0
      %1350 = vmatprep.subr.mxu0 0.0
      %1351 = vmatpush1.msra.mxu0 0.0
      %1352 = vmatprep.subr.mxu0 0.0
      %1353 = vmatpush1.msra.mxu0 0.0
      %1354 = vmatprep.subr.mxu0 0.0
      %1355 = vmatpush1.msra.mxu0 0.0
      %1356 = vmatprep.subr.mxu0 0.0
      %1357 = vmatpush1.msra.mxu0 0.0
      %1358 = vmatprep.subr.mxu0 0.0
      %1359 = vmatpush1.msra.mxu0 0.0
      %1360 = vmatprep.subr.mxu0 0.0
      %1361 = vmatpush1.msra.mxu0 0.0
      %1362 = vmatprep.subr.mxu0 0.0
      %1363 = vmatpush1.msra.mxu0 0.0
      %1364 = vmatprep.subr.mxu0 0.0
      %1365 = vmatpush1.msra.mxu0 0.0
      %1366 = vmatprep.subr.mxu0 0.0
      %1367 = vmatpush1.msra.mxu0 0.0
      %1368 = vmatprep.subr.mxu0 0.0
      %1369 = vmatpush1.msra.mxu0 0.0
      %1370 = vmatprep.subr.mxu0 0.0
      %1371 = vmatpush1.msra.mxu0 0.0
      %1372 = vmatprep.subr.mxu0 0.0
      %1373 = vmatpush1.msra.mxu0 0.0
      %1374 = vmatprep.subr.mxu0 0.0
      %1375 = vmatpush1.msra.mxu0 0.0
      %1376 = vmatprep.subr.mxu0 0.0
      %1377 = vmatpush1.msra.mxu0 0.0
      %1378 = vmatprep.subr.mxu0 0.0
      %1379 = vmatpush1.msra.mxu0 0.0
      %1380 = vmatprep.subr.mxu0 0.0
      %1381 = vmatpush1.msra.mxu0 0.0
      %1382 = vmatprep.subr.mxu0 0.0
      %1383 = vmatpush1.msra.mxu0 0.0
      %1384 = vmatprep.subr.mxu0 0.0
      %1385 = vmatpush1.msra.mxu0 0.0
      %1386 = vmatprep.subr.mxu0 0.0
      %1387 = vmatpush1.msra.mxu0 0.0
      %1388 = vmatprep.mubr.f32.mxu0 0.0
      %1389 = vmatmul.mubr.f32.gmra.mrb[0].mxu0 %v1224
      %v1390 = vpop.f32.mrb[0].mxu0
      %v1391 = vadd.f32 %v1302, %v1390
      %v1392 = vpop.f32.mrb[0].mxu0
      %v1393 = vadd.f32 %v1304, %v1392
      %1394 = vmatprep.mubr.f32.mxu0 0.0
      %1395 = vmatmul.mubr.f32.gmra.mrb[0].mxu0 %v1227
      %v1396 = vpop.f32.mrb[0].mxu0
      %v1397 = vadd.f32 %v1308, %v1396
      %v1398 = vpop.f32.mrb[0].mxu0
      %v1399 = vadd.f32 %v1310, %v1398
      %1400 = vmatprep.mubr.f32.mxu0 0.0
      %1401 = vmatmul.mubr.f32.gmra.mrb[0].mxu0 %v1230
      %v1402 = vpop.f32.mrb[0].mxu0
      %v1403 = vadd.f32 %v1314, %v1402
      %v1404 = vpop.f32.mrb[0].mxu0
      %v1405 = vadd.f32 %v1316, %v1404
      %1406 = vmatprep.mubr.f32.mxu0 0.0
      %1407 = vmatmul.mubr.f32.gmra.mrb[0].mxu0 %v1233
      %v1408 = vpop.f32.mrb[0].mxu0
      %v1409 = vadd.f32 %v1320, %v1408
      %v1410 = vpop.f32.mrb[0].mxu0
      %v1411 = vadd.f32 %v1322, %v1410
      %1412 = vdwg.mxu0
      %v1413 = vld [vmem:[%s5] sm:$0xff]
      %v1414 = vld [vmem:[%s5 + $0x8] sm:$0xff]
      %v1415 = vld [vmem:[%s5 + $0x10] sm:$0xff]
      %v1416 = vld [vmem:[%s5 + $0x18] sm:$0xff]
      %v1417 = vmul.f32 %v1391, %v1391
      %v1418 = vmul.f32 %v1393, %v1393
      %v1419 = vmul.f32 %v1397, %v1397
      %v1420 = vmul.f32 %v1399, %v1399
      %v1421 = vmul.f32 %v1403, %v1403
      %v1422 = vmul.f32 %v1405, %v1405
      %v1423 = vmul.f32 %v1409, %v1409
      %v1424 = vmul.f32 %v1411, %v1411
      %v1426 = vsel %vm1222, %v1413, 0
      %v1429 = vsel %vm1222, %v1414, 0
      %v1432 = vsel %vm1222, %v1415, 0
      %v1435 = vsel %vm1222, %v1416, 0
      %1437 = vmatprep.subr.mxu0 %v1418
      %1438 = vmatpush1.msra.mxu0 %v1417
      %1439 = vmatprep.subr.mxu0 %v1420
      %1440 = vmatpush1.msra.mxu0 %v1419
      %1441 = vmatprep.subr.mxu0 %v1422
      %1442 = vmatpush1.msra.mxu0 %v1421
      %1443 = vmatprep.subr.mxu0 %v1424
      %1444 = vmatpush1.msra.mxu0 %v1423
      %1445 = vmatprep.subr.mxu0 0.0
      %1446 = vmatpush1.msra.mxu0 0.0
      %1447 = vmatprep.subr.mxu0 0.0
      %1448 = vmatpush1.msra.mxu0 0.0
      %1449 = vmatprep.subr.mxu0 0.0
      %1450 = vmatpush1.msra.mxu0 0.0
      %1451 = vmatprep.subr.mxu0 0.0
      %1452 = vmatpush1.msra.mxu0 0.0
      %1453 = vmatprep.subr.mxu0 0.0
      %1454 = vmatpush1.msra.mxu0 0.0
      %1455 = vmatprep.subr.mxu0 0.0
      %1456 = vmatpush1.msra.mxu0 0.0
      %1457 = vmatprep.subr.mxu0 0.0
      %1458 = vmatpush1.msra.mxu0 0.0
      %1459 = vmatprep.subr.mxu0 0.0
      %1460 = vmatpush1.msra.mxu0 0.0
      %1461 = vmatprep.subr.mxu0 0.0
      %1462 = vmatpush1.msra.mxu0 0.0
      %1463 = vmatprep.subr.mxu0 0.0
      %1464 = vmatpush1.msra.mxu0 0.0
      %1465 = vmatprep.subr.mxu0 0.0
      %1466 = vmatpush1.msra.mxu0 0.0
      %1467 = vmatprep.subr.mxu0 0.0
      %1468 = vmatpush1.msra.mxu0 0.0
      %1469 = vmatprep.subr.mxu0 0.0
      %1470 = vmatpush1.msra.mxu0 0.0
      %1471 = vmatprep.subr.mxu0 0.0
      %1472 = vmatpush1.msra.mxu0 0.0
      %1473 = vmatprep.subr.mxu0 0.0
      %1474 = vmatpush1.msra.mxu0 0.0
      %1475 = vmatprep.subr.mxu0 0.0
      %1476 = vmatpush1.msra.mxu0 0.0
      %1477 = vmatprep.subr.mxu0 0.0
      %1478 = vmatpush1.msra.mxu0 0.0
      %1479 = vmatprep.subr.mxu0 0.0
      %1480 = vmatpush1.msra.mxu0 0.0
      %1481 = vmatprep.subr.mxu0 0.0
      %1482 = vmatpush1.msra.mxu0 0.0
      %1483 = vmatprep.subr.mxu0 0.0
      %1484 = vmatpush1.msra.mxu0 0.0
      %1485 = vmatprep.subr.mxu0 0.0
      %1486 = vmatpush1.msra.mxu0 0.0
      %1487 = vmatprep.subr.mxu0 0.0
      %1488 = vmatpush1.msra.mxu0 0.0
      %1489 = vmatprep.subr.mxu0 0.0
      %1490 = vmatpush1.msra.mxu0 0.0
      %1491 = vmatprep.subr.mxu0 0.0
      %1492 = vmatpush1.msra.mxu0 0.0
      %1493 = vmatprep.subr.mxu0 0.0
      %1494 = vmatpush1.msra.mxu0 0.0
      %1495 = vmatprep.subr.mxu0 0.0
      %1496 = vmatpush1.msra.mxu0 0.0
      %1497 = vmatprep.subr.mxu0 0.0
      %1498 = vmatpush1.msra.mxu0 0.0
      %1499 = vmatprep.subr.mxu0 0.0
      %1500 = vmatpush1.msra.mxu0 0.0
      %1501 = vmatprep.mubr.f32.mxu0 0.0
      %1502 = vmatmul.mubr.f32.gmra.mrb[0].mxu0 %v1426
      %v1503 = vpop.f32.mrb[0].mxu0
      %v1504 = vadd.f32 0.0, %v1503
      %v1505 = vpop.f32.mrb[0].mxu0
      %v1506 = vadd.f32 0.0, %v1505
      %1507 = vmatprep.mubr.f32.mxu0 0.0
      %1508 = vmatmul.mubr.f32.gmra.mrb[0].mxu0 %v1429
      %v1509 = vpop.f32.mrb[0].mxu0
      %v1510 = vadd.f32 0.0, %v1509
      %v1511 = vpop.f32.mrb[0].mxu0
      %v1512 = vadd.f32 0.0, %v1511
      %1513 = vmatprep.mubr.f32.mxu0 0.0
      %1514 = vmatmul.mubr.f32.gmra.mrb[0].mxu0 %v1432
      %v1515 = vpop.f32.mrb[0].mxu0
      %v1516 = vadd.f32 0.0, %v1515
      %v1517 = vpop.f32.mrb[0].mxu0
      %v1518 = vadd.f32 0.0, %v1517
      %1519 = vmatprep.mubr.f32.mxu0 0.0
      %1520 = vmatmul.mubr.f32.gmra.mrb[0].mxu0 %v1435
      %v1521 = vpop.f32.mrb[0].mxu0
      %v1522 = vadd.f32 0.0, %v1521
      %v1523 = vpop.f32.mrb[0].mxu0
      %v1524 = vadd.f32 0.0, %v1523
      %1525 = vdwg.mxu0
      %v1526 = vmul.f32 %v1504, 2e-05
      %v1527 = vmul.f32 %v1506, 2e-05
      %v1528 = vmul.f32 %v1510, 2e-05
      %v1529 = vmul.f32 %v1512, 2e-05
      %v1530 = vmul.f32 %v1516, 2e-05
      %v1531 = vmul.f32 %v1518, 2e-05
      %v1532 = vmul.f32 %v1522, 2e-05
      %v1533 = vmul.f32 %v1524, 2e-05
      %v1534 = vadd.f32 %v1526, 1.0
      %v1535 = vadd.f32 %v1527, 1.0
      %v1536 = vadd.f32 %v1528, 1.0
      %v1537 = vadd.f32 %v1529, 1.0
      %v1538 = vadd.f32 %v1530, 1.0
      %v1539 = vadd.f32 %v1531, 1.0
      %v1540 = vadd.f32 %v1532, 1.0
      %v1541 = vadd.f32 %v1533, 1.0
      %v1542 = vrsqrt.pop %v1534
      %v1543 = vrsqrt.pop %v1535
      %v1544 = vrsqrt.pop %v1536
      %v1545 = vrsqrt.pop %v1537
      %v1546 = vrsqrt.pop %v1538
      %v1547 = vrsqrt.pop %v1539
      %v1548 = vrsqrt.pop %v1540
      %v1549 = vrsqrt.pop %v1541
      %v1550 = vrsqrt.pop %v1542
      %v1551 = vmul.f32 %v1542, %v1550
      %vm1552 = vcmp.eq.f32.partialorder %v1542, inf
      %v1553 = vsel %vm1552, %v1542, %v1551
      %vm1554 = vcmp.eq.f32.partialorder %v1542, 0.0
      %v1555 = vand.u32 %v1542, 2147483648
      %v1556 = vsel %vm1554, %v1555, %v1553
      %v1557 = vrsqrt.pop %v1543
      %v1558 = vmul.f32 %v1543, %v1557
      %vm1559 = vcmp.eq.f32.partialorder %v1543, inf
      %v1560 = vsel %vm1559, %v1543, %v1558
      %vm1561 = vcmp.eq.f32.partialorder %v1543, 0.0
      %v1562 = vand.u32 %v1543, 2147483648
      %v1563 = vsel %vm1561, %v1562, %v1560
      %v1564 = vrsqrt.pop %v1544
      %v1565 = vmul.f32 %v1544, %v1564
      %vm1566 = vcmp.eq.f32.partialorder %v1544, inf
      %v1567 = vsel %vm1566, %v1544, %v1565
      %vm1568 = vcmp.eq.f32.partialorder %v1544, 0.0
      %v1569 = vand.u32 %v1544, 2147483648
      %v1570 = vsel %vm1568, %v1569, %v1567
      %v1571 = vrsqrt.pop %v1545
      %v1572 = vmul.f32 %v1545, %v1571
      %vm1573 = vcmp.eq.f32.partialorder %v1545, inf
      %v1574 = vsel %vm1573, %v1545, %v1572
      %vm1575 = vcmp.eq.f32.partialorder %v1545, 0.0
      %v1576 = vand.u32 %v1545, 2147483648
      %v1577 = vsel %vm1575, %v1576, %v1574
      %v1578 = vrsqrt.pop %v1546
      %v1579 = vmul.f32 %v1546, %v1578
      %vm1580 = vcmp.eq.f32.partialorder %v1546, inf
      %v1581 = vsel %vm1580, %v1546, %v1579
      %vm1582 = vcmp.eq.f32.partialorder %v1546, 0.0
      %v1583 = vand.u32 %v1546, 2147483648
      %v1584 = vsel %vm1582, %v1583, %v1581
      %v1585 = vrsqrt.pop %v1547
      %v1586 = vmul.f32 %v1547, %v1585
      %vm1587 = vcmp.eq.f32.partialorder %v1547, inf
      %v1588 = vsel %vm1587, %v1547, %v1586
      %vm1589 = vcmp.eq.f32.partialorder %v1547, 0.0
      %v1590 = vand.u32 %v1547, 2147483648
      %v1591 = vsel %vm1589, %v1590, %v1588
      %v1592 = vrsqrt.pop %v1548
      %v1593 = vmul.f32 %v1548, %v1592
      %vm1594 = vcmp.eq.f32.partialorder %v1548, inf
      %v1595 = vsel %vm1594, %v1548, %v1593
      %vm1596 = vcmp.eq.f32.partialorder %v1548, 0.0
      %v1597 = vand.u32 %v1548, 2147483648
      %v1598 = vsel %vm1596, %v1597, %v1595
      %v1599 = vrsqrt.pop %v1549
      %v1600 = vmul.f32 %v1549, %v1599
      %vm1601 = vcmp.eq.f32.partialorder %v1549, inf
      %v1602 = vsel %vm1601, %v1549, %v1600
      %vm1603 = vcmp.eq.f32.partialorder %v1549, 0.0
      %v1604 = vand.u32 %v1549, 2147483648
      %v1605 = vsel %vm1603, %v1604, %v1602
      %v1606 = vmul.f32 %v1542, %v1556
      %v1607 = vmul.f32 %v1543, %v1563
      %v1608 = vmul.f32 %v1544, %v1570
      %v1609 = vmul.f32 %v1545, %v1577
      %v1610 = vmul.f32 %v1546, %v1584
      %v1611 = vmul.f32 %v1547, %v1591
      %v1612 = vmul.f32 %v1548, %v1598
      %v1613 = vmul.f32 %v1549, %v1605
      %v1614 = vmul.f32 %v1391, %v1606
      %v1615 = vmul.f32 %v1393, %v1607
      %v1616 = vmul.f32 %v1397, %v1608
      %v1617 = vmul.f32 %v1399, %v1609
      %v1618 = vmul.f32 %v1403, %v1610
      %v1619 = vmul.f32 %v1405, %v1611
      %v1620 = vmul.f32 %v1409, %v1612
      %v1621 = vmul.f32 %v1411, %v1613
      %1622 = vst [vmem:[%s251] sm:$0xff] %v1614
      %1623 = vst [vmem:[%s251 + $0x8] sm:$0xff] %v1615
      %1624 = vst [vmem:[%s251 + $0x10] sm:$0xff] %v1616
      %1625 = vst [vmem:[%s251 + $0x18] sm:$0xff] %v1617
      %1626 = vst [vmem:[%s251 + $0x20] sm:$0xff] %v1618
      %1627 = vst [vmem:[%s251 + $0x28] sm:$0xff] %v1619
      %1628 = vst [vmem:[%s251 + $0x30] sm:$0xff] %v1620
      %1629 = vst [vmem:[%s251 + $0x38] sm:$0xff] %v1621
      %p1630 = scmp.lt.s32.totalorder %s17, 1
      %s1631 = scalar_select %p1630, %s17, 1
      %s1632 = smul.addr %s1631, 8
      %s1633 = smul.addr %s1632, 8
      %s1634 = scalar_lea.vmem %s6, %s1633
      // Predicated region
      $region45: #{dcfnet_feature_forward.1} parent=43 // pred_check
        %p1635 = pneg %p166
      $region46: #{dcfnet_feature_forward.1} parent=43 // pred_check_branch
        %1637 = sbr.rel (%p1635) target = $region48
      $region47: #{dcfnet_feature_forward.1} parent=43 // pred_region
        _
      $region48: #{dcfnet_feature_forward.1} parent=43 // pred_fallthru
        _
    $region44: #{dcfnet_feature_forward.1} parent=5 // pred_fallthru
      _
    %p1638 = scmp.le.s32.totalorder 2, %s12
    // Predicated region
    $region49: #{dcfnet_feature_forward.1} parent=5 // pred_check
      %p1639 = pneg %p1638
    $region50: #{dcfnet_feature_forward.1} parent=5 // pred_check_branch
      %1641 = sbr.rel (%p1639) target = $region52
    $region51: #{dcfnet_feature_forward.1} parent=5 // pred_region
      %s1642 = ssub.s32 %s12, 2
      // Predicated region
      $region53: #{dcfnet_feature_forward.1} parent=51 // pred_check
        %p1643 = pneg %p172
      $region54: #{dcfnet_feature_forward.1} parent=51 // pred_check_branch
        %1645 = sbr.rel (%p1643) target = $region56
      $region55: #{dcfnet_feature_forward.1} parent=51 // pred_region
        %p1646 = scmp.lt.s32.totalorder %s18, 1
        %s1647 = scalar_select %p1646, %s18, 1
        %s1648 = smul.addr %s1647, 8
        %s1649 = smul.addr %s1648, 8
        %s1650 = scalar_lea.vmem %s6, %s1649
      $region56: #{dcfnet_feature_forward.1} parent=51 // pred_fallthru
        _
    $region52: #{dcfnet_feature_forward.1} parent=5 // pred_fallthru
      _
  $region6: #{dcfnet_feature_forward.1} parent=0 // loop_footer
    %s16 = sadd.s32 1, %s12
  $region7: #{dcfnet_feature_forward.1} parent=0 // loop_footer_branch
    %11 = sbr.rel target = $region3
  $region8: #{dcfnet_feature_forward.1} parent=0 // loop_exit
    _

</llo_original>
